<compile_context>
chip_gen: v7x
topology: tpu7x:2x2x1
jax: 0.10.0
libtpu: 0.0.40
codegen_flags: <defaults>
</compile_context>

<pallas_src>
import jax
import jax.numpy as jnp
from jax.experimental import pallas as pl
from jax.experimental.pallas import tpu as pltpu

_HIGH = jax.lax.Precision.HIGHEST


def mlp_kernel(x_ref,
               w1_ref, b1_ref,
               w2_ref, b2_ref,
               w3_ref, b3_ref,
               w4_ref, b4_ref,
               o_ref):
    # x_ref is (TB, 9) batch-major (native HBM layout; no wrapper transpose).
    # Layer 1 folds the transpose into the matmul:
    #   (out, in) x (TB, in) contracted over `in` -> (out, TB) feature-major.
    x = x_ref[...]
    h = jax.lax.dot_general(
        w1_ref[...], x, (((1,), (1,)), ((), ())),
        precision=_HIGH, preferred_element_type=jnp.float32) + b1_ref[...]
    h = jnp.tanh(h)
    # Remaining layers stay feature-major: h = tanh(W @ h + b), b is (out, 1)
    # for a free lane-broadcast on the VPU.
    h = jnp.tanh(jnp.dot(w2_ref[...], h, precision=_HIGH,
                         preferred_element_type=jnp.float32) + b2_ref[...])
    h = jnp.tanh(jnp.dot(w3_ref[...], h, precision=_HIGH,
                         preferred_element_type=jnp.float32) + b3_ref[...])
    # NOTE: if profiling shows the EUP (tanh chain) is binding on v6e/v7x, a
    # bf16 tanh path would give ~2x there; kept f32 for v5e and the 1e-5 check.
    o_ref[...] = jnp.dot(w4_ref[...], h, precision=_HIGH,
                         preferred_element_type=jnp.float32) + b4_ref[...]


def _choose_batch_tile(B, max_tile, lane=128):
    """Batch rows per grid step.

    Keeps >= 2 grid steps when B >= 2*lane (so both v7x TensorCores get work),
    caps the tile at `max_tile`, and rounds the per-step share up to a lane
    multiple so ragged-tail waste is bounded by less than one tile.
    """
    if B <= 2 * lane:
        return B  # single full-array block (legal for any B: dims == array dims)
    n_steps = max(2, pl.cdiv(B, max_tile))
    per_step = pl.cdiv(B, n_steps)
    return min(max_tile, lane * pl.cdiv(per_step, lane))


def net1_forward(x, params, *, max_batch_tile=8192):
    """x: (B, 9) float32 (native PyTorch layout).

    params: PyTorch-layout weights w_i (out, in), biases b_i (out, 1).
    Returns (B, 2) float32.
    """
    B, in_dim = x.shape
    out_dim = params["w4"].shape[0]

    TB = _choose_batch_tile(B, max_batch_tile)
    grid = (pl.cdiv(B, TB),)

    args = (
        x,
        params["w1"], params["b1"],
        params["w2"], params["b2"],
        params["w3"], params["b3"],
        params["w4"], params["b4"],
    )

    def const_spec(a):
        # Full-array block, same block every grid step -> stays VMEM-resident.
        return pl.BlockSpec(a.shape, lambda i: (0,) * a.ndim)

    in_specs = [pl.BlockSpec((TB, in_dim), lambda i: (i, 0))]
    in_specs += [const_spec(a) for a in args[1:]]
    out_specs = pl.BlockSpec((out_dim, TB), lambda i: (0, i))

    # Advisory cost estimate so XLA schedules this call sensibly when embedded
    # in a bigger graph (review suggestion; MXU micro-opts skipped on purpose).
    macs = 9 * 50 + 50 * 30 + 30 * 10 + 10 * 2
    param_bytes = sum(int(a.size) * 4 for a in args[1:])
    cost = pl.CostEstimate(
        flops=2 * macs * B,
        transcendentals=(50 + 30 + 10) * B,
        bytes_accessed=(in_dim + out_dim) * 4 * B + param_bytes,
    )

    outT = pl.pallas_call(
        mlp_kernel,
        out_shape=jax.ShapeDtypeStruct((out_dim, B), jnp.float32),
        grid=grid,
        in_specs=in_specs,
        out_specs=out_specs,
        compiler_params=pltpu.CompilerParams(
            dimension_semantics=("parallel",),
            vmem_limit_bytes=32 * 1024 * 1024,
        ),
        cost_estimate=cost,
    )(*args)

    return outT.T  # (B, 2), matching the PyTorch module's output layout.


def init_params(key):
    """Deterministic init matching nn.Linear (weights (out,in), biases (out,1))."""
    dims = [(9, 50), (50, 30), (30, 10), (10, 2)]
    params = {}
    for i, (fan_in, fan_out) in enumerate(dims, start=1):
        key, kw, kb = jax.random.split(key, 3)
        bound = 1.0 / (fan_in ** 0.5)  # PyTorch Linear default init scheme
        params[f"w{i}"] = jax.random.uniform(
            kw, (fan_out, fan_in), jnp.float32, minval=-bound, maxval=bound
        )
        params[f"b{i}"] = jax.random.uniform(
            kb, (fan_out, 1), jnp.float32, minval=-bound, maxval=bound
        )
    return params


if __name__ == "__main__":
    key = jax.random.PRNGKey(0)
    key, kx = jax.random.split(key)
    params = init_params(key)

    def ref_forward(xr):
        h = xr
        for i in range(1, 4):
            h = jnp.tanh(jnp.dot(h, params[f"w{i}"].T, precision=_HIGH)
                         + params[f"b{i}"].T)
        return jnp.dot(h, params["w4"].T, precision=_HIGH) + params["b4"].T

    # Small-shape check (single full-array block, grid=(1,)).
    B = 8
    x = jax.random.normal(kx, (B, 9), dtype=jnp.float32)
    out = jax.block_until_ready(net1_forward(x, params))
    assert out.shape == (B, 2), out.shape
    assert jnp.allclose(out, ref_forward(x), atol=1e-5, rtol=1e-5)

    # Multi-step + ragged-boundary check (grid=(2,), TB=256, last block masked)
    # exercising the large-batch path the performance changes target.
    key, kx2 = jax.random.split(key)
    B2 = 300
    x2 = jax.random.normal(kx2, (B2, 9), dtype=jnp.float32)
    out2 = jax.block_until_ready(net1_forward(x2, params))
    assert out2.shape == (B2, 2), out2.shape
    assert jnp.allclose(out2, ref_forward(x2), atol=1e-5, rtol=1e-5)

    print("KERNEL_OK")
</pallas_src>

<mosaic_0001>
module attributes {stable_mosaic.version = 11 : i64} {
  func.func @mlp_kernel(%arg0: i32, %arg1: memref<8x9xf32, #tpu.memory_space<vmem>>, %arg2: memref<50x9xf32, #tpu.memory_space<vmem>>, %arg3: memref<50x1xf32, #tpu.memory_space<vmem>>, %arg4: memref<30x50xf32, #tpu.memory_space<vmem>>, %arg5: memref<30x1xf32, #tpu.memory_space<vmem>>, %arg6: memref<10x30xf32, #tpu.memory_space<vmem>>, %arg7: memref<10x1xf32, #tpu.memory_space<vmem>>, %arg8: memref<2x10xf32, #tpu.memory_space<vmem>>, %arg9: memref<2x1xf32, #tpu.memory_space<vmem>>, %arg10: memref<2x8xf32, #tpu.memory_space<vmem>>) attributes {dimension_semantics = [#tpu.dimension_semantics<parallel>], iteration_bounds = array<i64: 1>, scalar_prefetch = 0 : i64, scratch_operands = 0 : i64, tpu.core_type = #tpu.core_type<tc>, window_params = [{transform_indices = @transform_0, window_bounds = array<i64: 8, 9>}, {pipeline_mode = #tpu.pipeline_mode<synchronous>, transform_indices = @transform_1, window_bounds = array<i64: 50, 9>}, {pipeline_mode = #tpu.pipeline_mode<synchronous>, transform_indices = @transform_2, window_bounds = array<i64: 50, 1>}, {pipeline_mode = #tpu.pipeline_mode<synchronous>, transform_indices = @transform_3, window_bounds = array<i64: 30, 50>}, {pipeline_mode = #tpu.pipeline_mode<synchronous>, transform_indices = @transform_4, window_bounds = array<i64: 30, 1>}, {pipeline_mode = #tpu.pipeline_mode<synchronous>, transform_indices = @transform_5, window_bounds = array<i64: 10, 30>}, {pipeline_mode = #tpu.pipeline_mode<synchronous>, transform_indices = @transform_6, window_bounds = array<i64: 10, 1>}, {pipeline_mode = #tpu.pipeline_mode<synchronous>, transform_indices = @transform_7, window_bounds = array<i64: 2, 10>}, {pipeline_mode = #tpu.pipeline_mode<synchronous>, transform_indices = @transform_8, window_bounds = array<i64: 2, 1>}, {transform_indices = @transform_9, window_bounds = array<i64: 2, 8>}]} {
    %c0 = arith.constant 0 : index
    %c0_0 = arith.constant 0 : index
    %0 = vector.load %arg1[%c0, %c0_0] : memref<8x9xf32, #tpu.memory_space<vmem>>, vector<8x9xf32>
    %c0_1 = arith.constant 0 : index
    %c0_2 = arith.constant 0 : index
    %1 = vector.load %arg2[%c0_1, %c0_2] : memref<50x9xf32, #tpu.memory_space<vmem>>, vector<50x9xf32>
    %cst = arith.constant dense<0.000000e+00> : vector<50x8xf32>
    %2 = tpu.matmul %1, %0, %cst {dimension_numbers = #tpu.dot_dimension_numbers<[1], [1], [0], [0], [0, 0, 1, 0], [], []>, precision = #tpu.contract_precision<fp32>} : vector<50x9xf32>, vector<8x9xf32>, vector<50x8xf32> -> vector<50x8xf32>
    %c0_3 = arith.constant 0 : index
    %c0_4 = arith.constant 0 : index
    %3 = vector.load %arg3[%c0_3, %c0_4] : memref<50x1xf32, #tpu.memory_space<vmem>>, vector<50x1xf32>
    %4 = vector.broadcast %3 : vector<50x1xf32> to vector<50x8xf32>
    %5 = arith.addf %2, %4 : vector<50x8xf32>
    %6 = math.tanh %5 : vector<50x8xf32>
    %c0_5 = arith.constant 0 : index
    %c0_6 = arith.constant 0 : index
    %7 = vector.load %arg4[%c0_5, %c0_6] : memref<30x50xf32, #tpu.memory_space<vmem>>, vector<30x50xf32>
    %cst_7 = arith.constant dense<0.000000e+00> : vector<30x8xf32>
    %8 = tpu.matmul %7, %6, %cst_7 {dimension_numbers = #tpu.dot_dimension_numbers<[1], [0], [0], [1], [0, 0, 1, 1], [], []>, precision = #tpu.contract_precision<fp32>} : vector<30x50xf32>, vector<50x8xf32>, vector<30x8xf32> -> vector<30x8xf32>
    %c0_8 = arith.constant 0 : index
    %c0_9 = arith.constant 0 : index
    %9 = vector.load %arg5[%c0_8, %c0_9] : memref<30x1xf32, #tpu.memory_space<vmem>>, vector<30x1xf32>
    %10 = vector.broadcast %9 : vector<30x1xf32> to vector<30x8xf32>
    %11 = arith.addf %8, %10 : vector<30x8xf32>
    %12 = math.tanh %11 : vector<30x8xf32>
    %c0_10 = arith.constant 0 : index
    %c0_11 = arith.constant 0 : index
    %13 = vector.load %arg6[%c0_10, %c0_11] : memref<10x30xf32, #tpu.memory_space<vmem>>, vector<10x30xf32>
    %cst_12 = arith.constant dense<0.000000e+00> : vector<10x8xf32>
    %14 = tpu.matmul %13, %12, %cst_12 {dimension_numbers = #tpu.dot_dimension_numbers<[1], [0], [0], [1], [0, 0, 1, 1], [], []>, precision = #tpu.contract_precision<fp32>} : vector<10x30xf32>, vector<30x8xf32>, vector<10x8xf32> -> vector<10x8xf32>
    %c0_13 = arith.constant 0 : index
    %c0_14 = arith.constant 0 : index
    %15 = vector.load %arg7[%c0_13, %c0_14] : memref<10x1xf32, #tpu.memory_space<vmem>>, vector<10x1xf32>
    %16 = vector.broadcast %15 : vector<10x1xf32> to vector<10x8xf32>
    %17 = arith.addf %14, %16 : vector<10x8xf32>
    %18 = math.tanh %17 : vector<10x8xf32>
    %c0_15 = arith.constant 0 : index
    %c0_16 = arith.constant 0 : index
    %19 = vector.load %arg8[%c0_15, %c0_16] : memref<2x10xf32, #tpu.memory_space<vmem>>, vector<2x10xf32>
    %cst_17 = arith.constant dense<0.000000e+00> : vector<2x8xf32>
    %20 = tpu.matmul %19, %18, %cst_17 {dimension_numbers = #tpu.dot_dimension_numbers<[1], [0], [0], [1], [0, 0, 1, 1], [], []>, precision = #tpu.contract_precision<fp32>} : vector<2x10xf32>, vector<10x8xf32>, vector<2x8xf32> -> vector<2x8xf32>
    %c0_18 = arith.constant 0 : index
    %c0_19 = arith.constant 0 : index
    %21 = vector.load %arg9[%c0_18, %c0_19] : memref<2x1xf32, #tpu.memory_space<vmem>>, vector<2x1xf32>
    %22 = vector.broadcast %21 : vector<2x1xf32> to vector<2x8xf32>
    %23 = arith.addf %20, %22 : vector<2x8xf32>
    %c0_20 = arith.constant 0 : index
    %c0_21 = arith.constant 0 : index
    %24 = vector.load %arg10[%c0_20, %c0_21] : memref<2x8xf32, #tpu.memory_space<vmem>>, vector<2x8xf32>
    tpu.vector_store %arg10[%c0_20, %c0_21], %23 {strides = array<i32>} : memref<2x8xf32, #tpu.memory_space<vmem>>, vector<2x8xf32>,
    return
  }
  func.func @transform_0(%arg0: i32) -> (i32, i32) {
    %c0_i32 = arith.constant 0 : i32
    %c0_i32_0 = arith.constant 0 : i32
    return %arg0, %c0_i32 : i32, i32
  }
  func.func @transform_1(%arg0: i32) -> (i32, i32) {
    %c0_i32 = arith.constant 0 : i32
    %c0_i32_0 = arith.constant 0 : i32
    %c0_i32_1 = arith.constant 0 : i32
    return %c0_i32, %c0_i32_0 : i32, i32
  }
  func.func @transform_2(%arg0: i32) -> (i32, i32) {
    %c0_i32 = arith.constant 0 : i32
    %c0_i32_0 = arith.constant 0 : i32
    %c0_i32_1 = arith.constant 0 : i32
    return %c0_i32, %c0_i32_0 : i32, i32
  }
  func.func @transform_3(%arg0: i32) -> (i32, i32) {
    %c0_i32 = arith.constant 0 : i32
    %c0_i32_0 = arith.constant 0 : i32
    %c0_i32_1 = arith.constant 0 : i32
    return %c0_i32, %c0_i32_0 : i32, i32
  }
  func.func @transform_4(%arg0: i32) -> (i32, i32) {
    %c0_i32 = arith.constant 0 : i32
    %c0_i32_0 = arith.constant 0 : i32
    %c0_i32_1 = arith.constant 0 : i32
    return %c0_i32, %c0_i32_0 : i32, i32
  }
  func.func @transform_5(%arg0: i32) -> (i32, i32) {
    %c0_i32 = arith.constant 0 : i32
    %c0_i32_0 = arith.constant 0 : i32
    %c0_i32_1 = arith.constant 0 : i32
    return %c0_i32, %c0_i32_0 : i32, i32
  }
  func.func @transform_6(%arg0: i32) -> (i32, i32) {
    %c0_i32 = arith.constant 0 : i32
    %c0_i32_0 = arith.constant 0 : i32
    %c0_i32_1 = arith.constant 0 : i32
    return %c0_i32, %c0_i32_0 : i32, i32
  }
  func.func @transform_7(%arg0: i32) -> (i32, i32) {
    %c0_i32 = arith.constant 0 : i32
    %c0_i32_0 = arith.constant 0 : i32
    %c0_i32_1 = arith.constant 0 : i32
    return %c0_i32, %c0_i32_0 : i32, i32
  }
  func.func @transform_8(%arg0: i32) -> (i32, i32) {
    %c0_i32 = arith.constant 0 : i32
    %c0_i32_0 = arith.constant 0 : i32
    %c0_i32_1 = arith.constant 0 : i32
    return %c0_i32, %c0_i32_0 : i32, i32
  }
  func.func @transform_9(%arg0: i32) -> (i32, i32) {
    %c0_i32 = arith.constant 0 : i32
    %c0_i32_0 = arith.constant 0 : i32
    return %c0_i32, %arg0 : i32, i32
  }
}

</mosaic_0001>

<llo_original>
// kernel: tpu_custom_call.1
$region0: #{tpu_custom_call.1}
  #allocation0 [shape = 'u32[]', space=smem, size = 0x4, offset = 0x4, fixed_abs, tag = 'smem constant byte address 0x4 - core index']
  #allocation1 [shape = 'u32[144,128]{1,0:T(1,128)}', space=vmem, size = 0x12000, scoped, tag = 'internal scratch']
  %s0 = inlined_call_operand.vmem [shape: f32[8,9], index: 0, kind: input, shape index: {}]
  %s1 = inlined_call_operand.vmem [shape: f32[50,9], index: 1, kind: input, shape index: {}]
  %s2 = inlined_call_operand.vmem [shape: f32[50,1], index: 2, kind: input, shape index: {}]
  %s3 = inlined_call_operand.vmem [shape: f32[30,50], index: 3, kind: input, shape index: {}]
  %s4 = inlined_call_operand.vmem [shape: f32[30,1], index: 4, kind: input, shape index: {}]
  %s5 = inlined_call_operand.vmem [shape: f32[10,30], index: 5, kind: input, shape index: {}]
  %s6 = inlined_call_operand.vmem [shape: f32[10,1], index: 6, kind: input, shape index: {}]
  %s7 = inlined_call_operand.vmem [shape: f32[2,10], index: 7, kind: input, shape index: {}]
  %s8 = inlined_call_operand.vmem [shape: f32[2,1], index: 8, kind: input, shape index: {}]
  %s9 = inlined_call_operand.hbm [shape: f32[2,8], index: 9, kind: output, shape index: {}]
  %s10 = sld [smem:[#allocation0]]
  $region46: #{tpu_custom_call.1} parent=0
    _
  %s12 = ssub.s32 1, %s10
  %s13 = scalar_select 0, %s12, %s10
  $region1: #{tpu_custom_call.1} parent=0
    #allocation2 [shape = 'u8[1024]{0}', space=vmem, size = 0x400, scoped, tag = 'output window, operand 0, single buffered']
    #allocation3 [shape = 's32[1]{0}', space=sflag, size = 0x4, scoped, tag = 'scoped memory for tpu_custom_call.1']
    %14 = vsyncpa [#allocation3], 0
    // Predicated region
    $region2: #{tpu_custom_call.1} parent=1 // pred_check
      _
    $region3: #{tpu_custom_call.1} parent=1 // pred_check_branch
      %16 = sbr.rel (0) target = $region5
    $region4: #{tpu_custom_call.1} parent=1 // pred_region
      _
    $region5: #{tpu_custom_call.1} parent=1 // pred_fallthru
      _
    // Predicated region
    $region6: #{tpu_custom_call.1} parent=1 // pred_check
      _
    $region7: #{tpu_custom_call.1} parent=1 // pred_check_branch
      %18 = sbr.rel (0) target = $region9
    $region8: #{tpu_custom_call.1} parent=1 // pred_region
      _
    $region9: #{tpu_custom_call.1} parent=1 // pred_fallthru
      _
    // Predicated region
    $region10: #{tpu_custom_call.1} parent=1 // pred_check
      _
    $region11: #{tpu_custom_call.1} parent=1 // pred_check_branch
      %20 = sbr.rel (0) target = $region13
    $region12: #{tpu_custom_call.1} parent=1 // pred_region
      _
    $region13: #{tpu_custom_call.1} parent=1 // pred_fallthru
      _
    // Predicated region
    $region14: #{tpu_custom_call.1} parent=1 // pred_check
      _
    $region15: #{tpu_custom_call.1} parent=1 // pred_check_branch
      %22 = sbr.rel (0) target = $region17
    $region16: #{tpu_custom_call.1} parent=1 // pred_region
      _
    $region17: #{tpu_custom_call.1} parent=1 // pred_fallthru
      _
    // Predicated region
    $region18: #{tpu_custom_call.1} parent=1 // pred_check
      _
    $region19: #{tpu_custom_call.1} parent=1 // pred_check_branch
      %24 = sbr.rel (0) target = $region21
    $region20: #{tpu_custom_call.1} parent=1 // pred_region
      _
    $region21: #{tpu_custom_call.1} parent=1 // pred_fallthru
      _
    // Predicated region
    $region22: #{tpu_custom_call.1} parent=1 // pred_check
      _
    $region23: #{tpu_custom_call.1} parent=1 // pred_check_branch
      %26 = sbr.rel (0) target = $region25
    $region24: #{tpu_custom_call.1} parent=1 // pred_region
      _
    $region25: #{tpu_custom_call.1} parent=1 // pred_fallthru
      _
    // Predicated region
    $region26: #{tpu_custom_call.1} parent=1 // pred_check
      _
    $region27: #{tpu_custom_call.1} parent=1 // pred_check_branch
      %28 = sbr.rel (0) target = $region29
    $region28: #{tpu_custom_call.1} parent=1 // pred_region
      _
    $region29: #{tpu_custom_call.1} parent=1 // pred_fallthru
      _
    // Predicated region
    $region30: #{tpu_custom_call.1} parent=1 // pred_check
      _
    $region31: #{tpu_custom_call.1} parent=1 // pred_check_branch
      %30 = sbr.rel (0) target = $region33
    $region32: #{tpu_custom_call.1} parent=1 // pred_region
      _
    $region33: #{tpu_custom_call.1} parent=1 // pred_fallthru
      _
    // Predicated region
    $region34: #{tpu_custom_call.1} parent=1 // pred_check
      _
    $region35: #{tpu_custom_call.1} parent=1 // pred_check_branch
      %32 = sbr.rel (0) target = $region37
    $region36: #{tpu_custom_call.1} parent=1 // pred_region
      _
    $region37: #{tpu_custom_call.1} parent=1 // pred_fallthru
      _
    %v33 = vld [vmem:[%s0] sm:$0xff]
    %v34 = vld [vmem:[%s1] sm:$0xff]
    %v35 = vld [vmem:[%s1 + $0x8] sm:$0xff]
    %v36 = vld [vmem:[%s1 + $0x10] sm:$0xff]
    %v37 = vld [vmem:[%s1 + $0x18] sm:$0xff]
    %v38 = vld [vmem:[%s1 + $0x20] sm:$0xff]
    %v39 = vld [vmem:[%s1 + $0x28] sm:$0xff]
    %v40 = vld [vmem:[%s1 + $0x30] sm:$0x3]
    %v41 = vld [vmem:[%s2] sm:$0xff]
    %v42 = vld [vmem:[%s2 + $0x8] sm:$0xff]
    %v43 = vld [vmem:[%s2 + $0x10] sm:$0xff]
    %v44 = vld [vmem:[%s2 + $0x18] sm:$0xff]
    %v45 = vld [vmem:[%s2 + $0x20] sm:$0xff]
    %v46 = vld [vmem:[%s2 + $0x28] sm:$0xff]
    %v47 = vld [vmem:[%s2 + $0x30] sm:$0x3]
    %49 = vset.pattern.permute.xlu0 0
    %50 = vperm.xlu0 %49, %v41
    %v51 = vpop.permute.xlu0 %50
    %54 = vset.pattern.permute.xlu0 0
    %55 = vperm.xlu0 %54, %v42
    %v56 = vpop.permute.xlu0 %55
    %59 = vset.pattern.permute.xlu0 0
    %60 = vperm.xlu0 %59, %v43
    %v61 = vpop.permute.xlu0 %60
    %64 = vset.pattern.permute.xlu0 0
    %65 = vperm.xlu0 %64, %v44
    %v66 = vpop.permute.xlu0 %65
    %69 = vset.pattern.permute.xlu0 0
    %70 = vperm.xlu0 %69, %v45
    %v71 = vpop.permute.xlu0 %70
    %74 = vset.pattern.permute.xlu0 0
    %75 = vperm.xlu0 %74, %v46
    %v76 = vpop.permute.xlu0 %75
    %79 = vset.pattern.permute.xlu0 0
    %80 = vperm.xlu0 %79, %v47
    %v81 = vpop.permute.xlu0 %80
    %vm83 = vcmask 72704
    %v85 = vsel %vm83, %v34, 0
    %v88 = vsel %vm83, %v35, 0
    %v91 = vsel %vm83, %v36, 0
    %v94 = vsel %vm83, %v37, 0
    %v97 = vsel %vm83, %v38, 0
    %v100 = vsel %vm83, %v39, 0
    %v103 = vsel %vm83, %v40, 0
    %v106 = vsel %vm83, %v33, 0
    %108 = vmatprep.subr.mxu0 0.0
    %v109 = vand.u32 %v106, 4294901760
    %110 = vmatpush1.xpose.msra.mxu0 %v109
    %111 = vmatprep.subr.mxu0 0.0
    %112 = vmatpush1.xpose.msra.mxu0 0.0
    %113 = vmatprep.subr.mxu0 0.0
    %114 = vmatpush1.xpose.msra.mxu0 0.0
    %115 = vmatprep.subr.mxu0 0.0
    %116 = vmatpush1.xpose.msra.mxu0 0.0
    %117 = vmatprep.subr.mxu0 0.0
    %118 = vmatpush1.xpose.msra.mxu0 0.0
    %119 = vmatprep.subr.mxu0 0.0
    %120 = vmatpush1.xpose.msra.mxu0 0.0
    %121 = vmatprep.subr.mxu0 0.0
    %122 = vmatpush1.xpose.msra.mxu0 0.0
    %123 = vmatprep.subr.mxu0 0.0
    %124 = vmatpush1.xpose.msra.mxu0 0.0
    %125 = vmatprep.subr.mxu0 0.0
    %126 = vmatpush1.xpose.msra.mxu0 0.0
    %127 = vmatprep.subr.mxu0 0.0
    %128 = vmatpush1.xpose.msra.mxu0 0.0
    %129 = vmatprep.subr.mxu0 0.0
    %130 = vmatpush1.xpose.msra.mxu0 0.0
    %131 = vmatprep.subr.mxu0 0.0
    %132 = vmatpush1.xpose.msra.mxu0 0.0
    %133 = vmatprep.subr.mxu0 0.0
    %134 = vmatpush1.xpose.msra.mxu0 0.0
    %135 = vmatprep.subr.mxu0 0.0
    %136 = vmatpush1.xpose.msra.mxu0 0.0
    %137 = vmatprep.subr.mxu0 0.0
    %138 = vmatpush1.xpose.msra.mxu0 0.0
    %139 = vmatprep.subr.mxu0 0.0
    %140 = vmatpush1.xpose.msra.mxu0 0.0
    %141 = vmatprep.subr.mxu0 0.0
    %142 = vmatpush1.xpose.msra.mxu0 0.0
    %143 = vmatprep.subr.mxu0 0.0
    %144 = vmatpush1.xpose.msra.mxu0 0.0
    %145 = vmatprep.subr.mxu0 0.0
    %146 = vmatpush1.xpose.msra.mxu0 0.0
    %147 = vmatprep.subr.mxu0 0.0
    %148 = vmatpush1.xpose.msra.mxu0 0.0
    %149 = vmatprep.subr.mxu0 0.0
    %150 = vmatpush1.xpose.msra.mxu0 0.0
    %151 = vmatprep.subr.mxu0 0.0
    %152 = vmatpush1.xpose.msra.mxu0 0.0
    %153 = vmatprep.subr.mxu0 0.0
    %154 = vmatpush1.xpose.msra.mxu0 0.0
    %155 = vmatprep.subr.mxu0 0.0
    %156 = vmatpush1.xpose.msra.mxu0 0.0
    %157 = vmatprep.subr.mxu0 0.0
    %158 = vmatpush1.xpose.msra.mxu0 0.0
    %159 = vmatprep.subr.mxu0 0.0
    %160 = vmatpush1.xpose.msra.mxu0 0.0
    %161 = vmatprep.subr.mxu0 0.0
    %162 = vmatpush1.xpose.msra.mxu0 0.0
    %163 = vmatprep.subr.mxu0 0.0
    %164 = vmatpush1.xpose.msra.mxu0 0.0
    %165 = vmatprep.subr.mxu0 0.0
    %166 = vmatpush1.xpose.msra.mxu0 0.0
    %167 = vmatprep.subr.mxu0 0.0
    %168 = vmatpush1.xpose.msra.mxu0 0.0
    %169 = vmatprep.subr.mxu0 0.0
    %170 = vmatpush1.xpose.msra.mxu0 0.0
    %171 = vmatprep.subr.mxu0 0.0
    %172 = vmatpush1.xpose.msra.mxu0 0.0
    %173 = vmatprep.mubr.f32.mxu0 0.0
    %v174 = vand.u32 %v85, 4294901760
    %v175 = vsub.f32 %v85, %v174
    %v176 = vand.u32 %v175, 4294901760
    %v177 = vsub.f32 %v175, %v176
    %v178 = vand.u32 %v177, 4294901760
    %179 = vmatmul.mubr.f32.gmra.mrb[0].mxu0 %v178
    %v180 = vpop.f32.mrb[0].mxu0
    %v181 = vadd.f32 %v51, %v180
    %v182 = vpop.f32.mrb[0].mxu0
    %183 = vmatprep.mubr.f32.mxu0 0.0
    %v184 = vand.u32 %v88, 4294901760
    %v185 = vsub.f32 %v88, %v184
    %v186 = vand.u32 %v185, 4294901760
    %v187 = vsub.f32 %v185, %v186
    %v188 = vand.u32 %v187, 4294901760
    %189 = vmatmul.mubr.f32.gmra.mrb[0].mxu0 %v188
    %v190 = vpop.f32.mrb[0].mxu0
    %v191 = vadd.f32 %v56, %v190
    %v192 = vpop.f32.mrb[0].mxu0
    %193 = vmatprep.mubr.f32.mxu0 0.0
    %v194 = vand.u32 %v91, 4294901760
    %v195 = vsub.f32 %v91, %v194
    %v196 = vand.u32 %v195, 4294901760
    %v197 = vsub.f32 %v195, %v196
    %v198 = vand.u32 %v197, 4294901760
    %199 = vmatmul.mubr.f32.gmra.mrb[0].mxu0 %v198
    %v200 = vpop.f32.mrb[0].mxu0
    %v201 = vadd.f32 %v61, %v200
    %v202 = vpop.f32.mrb[0].mxu0
    %203 = vmatprep.mubr.f32.mxu0 0.0
    %v204 = vand.u32 %v94, 4294901760
    %v205 = vsub.f32 %v94, %v204
    %v206 = vand.u32 %v205, 4294901760
    %v207 = vsub.f32 %v205, %v206
    %v208 = vand.u32 %v207, 4294901760
    %209 = vmatmul.mubr.f32.gmra.mrb[0].mxu0 %v208
    %v210 = vpop.f32.mrb[0].mxu0
    %v211 = vadd.f32 %v66, %v210
    %v212 = vpop.f32.mrb[0].mxu0
    %213 = vmatprep.mubr.f32.mxu0 0.0
    %v214 = vand.u32 %v97, 4294901760
    %v215 = vsub.f32 %v97, %v214
    %v216 = vand.u32 %v215, 4294901760
    %v217 = vsub.f32 %v215, %v216
    %v218 = vand.u32 %v217, 4294901760
    %219 = vmatmul.mubr.f32.gmra.mrb[0].mxu0 %v218
    %v220 = vpop.f32.mrb[0].mxu0
    %v221 = vadd.f32 %v71, %v220
    %v222 = vpop.f32.mrb[0].mxu0
    %223 = vmatprep.mubr.f32.mxu0 0.0
    %v224 = vand.u32 %v100, 4294901760
    %v225 = vsub.f32 %v100, %v224
    %v226 = vand.u32 %v225, 4294901760
    %v227 = vsub.f32 %v225, %v226
    %v228 = vand.u32 %v227, 4294901760
    %229 = vmatmul.mubr.f32.gmra.mrb[0].mxu0 %v228
    %v230 = vpop.f32.mrb[0].mxu0
    %v231 = vadd.f32 %v76, %v230
    %v232 = vpop.f32.mrb[0].mxu0
    %233 = vmatprep.mubr.f32.mxu0 0.0
    %v234 = vand.u32 %v103, 4294901760
    %v235 = vsub.f32 %v103, %v234
    %v236 = vand.u32 %v235, 4294901760
    %v237 = vsub.f32 %v235, %v236
    %v238 = vand.u32 %v237, 4294901760
    %239 = vmatmul.mubr.f32.gmra.mrb[0].mxu0 %v238
    %v240 = vpop.f32.mrb[0].mxu0
    %v241 = vadd.f32 %v81, %v240
    %v242 = vpop.f32.mrb[0].mxu0
    %243 = vdwg.mxu0
    %244 = vmatprep.subr.mxu0 0.0
    %v245 = vand.u32 %v106, 4294901760
    %v246 = vsub.f32 %v106, %v245
    %v247 = vand.u32 %v246, 4294901760
    %v248 = vsub.f32 %v246, %v247
    %v249 = vand.u32 %v248, 4294901760
    %250 = vmatpush1.xpose.msra.mxu0 %v249
    %251 = vmatprep.subr.mxu0 0.0
    %252 = vmatpush1.xpose.msra.mxu0 0.0
    %253 = vmatprep.subr.mxu0 0.0
    %254 = vmatpush1.xpose.msra.mxu0 0.0
    %255 = vmatprep.subr.mxu0 0.0
    %256 = vmatpush1.xpose.msra.mxu0 0.0
    %257 = vmatprep.subr.mxu0 0.0
    %258 = vmatpush1.xpose.msra.mxu0 0.0
    %259 = vmatprep.subr.mxu0 0.0
    %260 = vmatpush1.xpose.msra.mxu0 0.0
    %261 = vmatprep.subr.mxu0 0.0
    %262 = vmatpush1.xpose.msra.mxu0 0.0
    %263 = vmatprep.subr.mxu0 0.0
    %264 = vmatpush1.xpose.msra.mxu0 0.0
    %265 = vmatprep.subr.mxu0 0.0
    %266 = vmatpush1.xpose.msra.mxu0 0.0
    %267 = vmatprep.subr.mxu0 0.0
    %268 = vmatpush1.xpose.msra.mxu0 0.0
    %269 = vmatprep.subr.mxu0 0.0
    %270 = vmatpush1.xpose.msra.mxu0 0.0
    %271 = vmatprep.subr.mxu0 0.0
    %272 = vmatpush1.xpose.msra.mxu0 0.0
    %273 = vmatprep.subr.mxu0 0.0
    %274 = vmatpush1.xpose.msra.mxu0 0.0
    %275 = vmatprep.subr.mxu0 0.0
    %276 = vmatpush1.xpose.msra.mxu0 0.0
    %277 = vmatprep.subr.mxu0 0.0
    %278 = vmatpush1.xpose.msra.mxu0 0.0
    %279 = vmatprep.subr.mxu0 0.0
    %280 = vmatpush1.xpose.msra.mxu0 0.0
    %281 = vmatprep.subr.mxu0 0.0
    %282 = vmatpush1.xpose.msra.mxu0 0.0
    %283 = vmatprep.subr.mxu0 0.0
    %284 = vmatpush1.xpose.msra.mxu0 0.0
    %285 = vmatprep.subr.mxu0 0.0
    %286 = vmatpush1.xpose.msra.mxu0 0.0
    %287 = vmatprep.subr.mxu0 0.0
    %288 = vmatpush1.xpose.msra.mxu0 0.0
    %289 = vmatprep.subr.mxu0 0.0
    %290 = vmatpush1.xpose.msra.mxu0 0.0
    %291 = vmatprep.subr.mxu0 0.0
    %292 = vmatpush1.xpose.msra.mxu0 0.0
    %293 = vmatprep.subr.mxu0 0.0
    %294 = vmatpush1.xpose.msra.mxu0 0.0
    %295 = vmatprep.subr.mxu0 0.0
    %296 = vmatpush1.xpose.msra.mxu0 0.0
    %297 = vmatprep.subr.mxu0 0.0
    %298 = vmatpush1.xpose.msra.mxu0 0.0
    %299 = vmatprep.subr.mxu0 0.0
    %300 = vmatpush1.xpose.msra.mxu0 0.0
    %301 = vmatprep.subr.mxu0 0.0
    %302 = vmatpush1.xpose.msra.mxu0 0.0
    %303 = vmatprep.subr.mxu0 0.0
    %304 = vmatpush1.xpose.msra.mxu0 0.0
    %305 = vmatprep.subr.mxu0 0.0
    %306 = vmatpush1.xpose.msra.mxu0 0.0
    %307 = vmatprep.subr.mxu0 0.0
    %308 = vmatpush1.xpose.msra.mxu0 0.0
    %309 = vmatprep.subr.mxu0 0.0
    %310 = vmatpush1.xpose.msra.mxu0 0.0
    %311 = vmatprep.subr.mxu0 0.0
    %312 = vmatpush1.xpose.msra.mxu0 0.0
    %313 = vmatprep.mubr.f32.mxu0 0.0
    %v314 = vand.u32 %v85, 4294901760
    %315 = vmatmul.mubr.f32.gmra.mrb[0].mxu0 %v314
    %v316 = vpop.f32.mrb[0].mxu0
    %v317 = vadd.f32 %v181, %v316
    %v318 = vpop.f32.mrb[0].mxu0
    %319 = vmatprep.mubr.f32.mxu0 0.0
    %v320 = vand.u32 %v88, 4294901760
    %321 = vmatmul.mubr.f32.gmra.mrb[0].mxu0 %v320
    %v322 = vpop.f32.mrb[0].mxu0
    %v323 = vadd.f32 %v191, %v322
    %v324 = vpop.f32.mrb[0].mxu0
    %325 = vmatprep.mubr.f32.mxu0 0.0
    %v326 = vand.u32 %v91, 4294901760
    %327 = vmatmul.mubr.f32.gmra.mrb[0].mxu0 %v326
    %v328 = vpop.f32.mrb[0].mxu0
    %v329 = vadd.f32 %v201, %v328
    %v330 = vpop.f32.mrb[0].mxu0
    %331 = vmatprep.mubr.f32.mxu0 0.0
    %v332 = vand.u32 %v94, 4294901760
    %333 = vmatmul.mubr.f32.gmra.mrb[0].mxu0 %v332
    %v334 = vpop.f32.mrb[0].mxu0
    %v335 = vadd.f32 %v211, %v334
    %v336 = vpop.f32.mrb[0].mxu0
    %337 = vmatprep.mubr.f32.mxu0 0.0
    %v338 = vand.u32 %v97, 4294901760
    %339 = vmatmul.mubr.f32.gmra.mrb[0].mxu0 %v338
    %v340 = vpop.f32.mrb[0].mxu0
    %v341 = vadd.f32 %v221, %v340
    %v342 = vpop.f32.mrb[0].mxu0
    %343 = vmatprep.mubr.f32.mxu0 0.0
    %v344 = vand.u32 %v100, 4294901760
    %345 = vmatmul.mubr.f32.gmra.mrb[0].mxu0 %v344
    %v346 = vpop.f32.mrb[0].mxu0
    %v347 = vadd.f32 %v231, %v346
    %v348 = vpop.f32.mrb[0].mxu0
    %349 = vmatprep.mubr.f32.mxu0 0.0
    %v350 = vand.u32 %v103, 4294901760
    %351 = vmatmul.mubr.f32.gmra.mrb[0].mxu0 %v350
    %v352 = vpop.f32.mrb[0].mxu0
    %v353 = vadd.f32 %v241, %v352
    %v354 = vpop.f32.mrb[0].mxu0
    %355 = vdwg.mxu0
    %356 = vmatprep.subr.mxu0 0.0
    %v357 = vand.u32 %v106, 4294901760
    %v358 = vsub.f32 %v106, %v357
    %359 = vmatpush1.xpose.msra.mxu0 %v358
    %360 = vmatprep.subr.mxu0 0.0
    %361 = vmatpush1.xpose.msra.mxu0 0.0
    %362 = vmatprep.subr.mxu0 0.0
    %363 = vmatpush1.xpose.msra.mxu0 0.0
    %364 = vmatprep.subr.mxu0 0.0
    %365 = vmatpush1.xpose.msra.mxu0 0.0
    %366 = vmatprep.subr.mxu0 0.0
    %367 = vmatpush1.xpose.msra.mxu0 0.0
    %368 = vmatprep.subr.mxu0 0.0
    %369 = vmatpush1.xpose.msra.mxu0 0.0
    %370 = vmatprep.subr.mxu0 0.0
    %371 = vmatpush1.xpose.msra.mxu0 0.0
    %372 = vmatprep.subr.mxu0 0.0
    %373 = vmatpush1.xpose.msra.mxu0 0.0
    %374 = vmatprep.subr.mxu0 0.0
    %375 = vmatpush1.xpose.msra.mxu0 0.0
    %376 = vmatprep.subr.mxu0 0.0
    %377 = vmatpush1.xpose.msra.mxu0 0.0
    %378 = vmatprep.subr.mxu0 0.0
    %379 = vmatpush1.xpose.msra.mxu0 0.0
    %380 = vmatprep.subr.mxu0 0.0
    %381 = vmatpush1.xpose.msra.mxu0 0.0
    %382 = vmatprep.subr.mxu0 0.0
    %383 = vmatpush1.xpose.msra.mxu0 0.0
    %384 = vmatprep.subr.mxu0 0.0
    %385 = vmatpush1.xpose.msra.mxu0 0.0
    %386 = vmatprep.subr.mxu0 0.0
    %387 = vmatpush1.xpose.msra.mxu0 0.0
    %388 = vmatprep.subr.mxu0 0.0
    %389 = vmatpush1.xpose.msra.mxu0 0.0
    %390 = vmatprep.subr.mxu0 0.0
    %391 = vmatpush1.xpose.msra.mxu0 0.0
    %392 = vmatprep.subr.mxu0 0.0
    %393 = vmatpush1.xpose.msra.mxu0 0.0
    %394 = vmatprep.subr.mxu0 0.0
    %395 = vmatpush1.xpose.msra.mxu0 0.0
    %396 = vmatprep.subr.mxu0 0.0
    %397 = vmatpush1.xpose.msra.mxu0 0.0
    %398 = vmatprep.subr.mxu0 0.0
    %399 = vmatpush1.xpose.msra.mxu0 0.0
    %400 = vmatprep.subr.mxu0 0.0
    %401 = vmatpush1.xpose.msra.mxu0 0.0
    %402 = vmatprep.subr.mxu0 0.0
    %403 = vmatpush1.xpose.msra.mxu0 0.0
    %404 = vmatprep.subr.mxu0 0.0
    %405 = vmatpush1.xpose.msra.mxu0 0.0
    %406 = vmatprep.subr.mxu0 0.0
    %407 = vmatpush1.xpose.msra.mxu0 0.0
    %408 = vmatprep.subr.mxu0 0.0
    %409 = vmatpush1.xpose.msra.mxu0 0.0
    %410 = vmatprep.subr.mxu0 0.0
    %411 = vmatpush1.xpose.msra.mxu0 0.0
    %412 = vmatprep.subr.mxu0 0.0
    %413 = vmatpush1.xpose.msra.mxu0 0.0
    %414 = vmatprep.subr.mxu0 0.0
    %415 = vmatpush1.xpose.msra.mxu0 0.0
    %416 = vmatprep.subr.mxu0 0.0
    %417 = vmatpush1.xpose.msra.mxu0 0.0
    %418 = vmatprep.subr.mxu0 0.0
    %419 = vmatpush1.xpose.msra.mxu0 0.0
    %420 = vmatprep.subr.mxu0 0.0
    %421 = vmatpush1.xpose.msra.mxu0 0.0
    %422 = vmatprep.mubr.f32.mxu0 0.0
    %v423 = vand.u32 %v85, 4294901760
    %v424 = vsub.f32 %v85, %v423
    %425 = vmatmul.mubr.f32.gmra.mrb[0].mxu0 %v424
    %v426 = vpop.f32.mrb[0].mxu0
    %v427 = vadd.f32 %v317, %v426
    %v428 = vpop.f32.mrb[0].mxu0
    %429 = vmatprep.mubr.f32.mxu0 0.0
    %v430 = vand.u32 %v88, 4294901760
    %v431 = vsub.f32 %v88, %v430
    %432 = vmatmul.mubr.f32.gmra.mrb[0].mxu0 %v431
    %v433 = vpop.f32.mrb[0].mxu0
    %v434 = vadd.f32 %v323, %v433
    %v435 = vpop.f32.mrb[0].mxu0
    %436 = vmatprep.mubr.f32.mxu0 0.0
    %v437 = vand.u32 %v91, 4294901760
    %v438 = vsub.f32 %v91, %v437
    %439 = vmatmul.mubr.f32.gmra.mrb[0].mxu0 %v438
    %v440 = vpop.f32.mrb[0].mxu0
    %v441 = vadd.f32 %v329, %v440
    %v442 = vpop.f32.mrb[0].mxu0
    %443 = vmatprep.mubr.f32.mxu0 0.0
    %v444 = vand.u32 %v94, 4294901760
    %v445 = vsub.f32 %v94, %v444
    %446 = vmatmul.mubr.f32.gmra.mrb[0].mxu0 %v445
    %v447 = vpop.f32.mrb[0].mxu0
    %v448 = vadd.f32 %v335, %v447
    %v449 = vpop.f32.mrb[0].mxu0
    %450 = vmatprep.mubr.f32.mxu0 0.0
    %v451 = vand.u32 %v97, 4294901760
    %v452 = vsub.f32 %v97, %v451
    %453 = vmatmul.mubr.f32.gmra.mrb[0].mxu0 %v452
    %v454 = vpop.f32.mrb[0].mxu0
    %v455 = vadd.f32 %v341, %v454
    %v456 = vpop.f32.mrb[0].mxu0
    %457 = vmatprep.mubr.f32.mxu0 0.0
    %v458 = vand.u32 %v100, 4294901760
    %v459 = vsub.f32 %v100, %v458
    %460 = vmatmul.mubr.f32.gmra.mrb[0].mxu0 %v459
    %v461 = vpop.f32.mrb[0].mxu0
    %v462 = vadd.f32 %v347, %v461
    %v463 = vpop.f32.mrb[0].mxu0
    %464 = vmatprep.mubr.f32.mxu0 0.0
    %v465 = vand.u32 %v103, 4294901760
    %v466 = vsub.f32 %v103, %v465
    %467 = vmatmul.mubr.f32.gmra.mrb[0].mxu0 %v466
    %v468 = vpop.f32.mrb[0].mxu0
    %v469 = vadd.f32 %v353, %v468
    %v470 = vpop.f32.mrb[0].mxu0
    %471 = vdwg.mxu0
    %472 = vmatprep.subr.mxu0 0.0
    %v473 = vand.u32 %v106, 4294901760
    %474 = vmatpush1.xpose.msra.mxu0 %v473
    %475 = vmatprep.subr.mxu0 0.0
    %476 = vmatpush1.xpose.msra.mxu0 0.0
    %477 = vmatprep.subr.mxu0 0.0
    %478 = vmatpush1.xpose.msra.mxu0 0.0
    %479 = vmatprep.subr.mxu0 0.0
    %480 = vmatpush1.xpose.msra.mxu0 0.0
    %481 = vmatprep.subr.mxu0 0.0
    %482 = vmatpush1.xpose.msra.mxu0 0.0
    %483 = vmatprep.subr.mxu0 0.0
    %484 = vmatpush1.xpose.msra.mxu0 0.0
    %485 = vmatprep.subr.mxu0 0.0
    %486 = vmatpush1.xpose.msra.mxu0 0.0
    %487 = vmatprep.subr.mxu0 0.0
    %488 = vmatpush1.xpose.msra.mxu0 0.0
    %489 = vmatprep.subr.mxu0 0.0
    %490 = vmatpush1.xpose.msra.mxu0 0.0
    %491 = vmatprep.subr.mxu0 0.0
    %492 = vmatpush1.xpose.msra.mxu0 0.0
    %493 = vmatprep.subr.mxu0 0.0
    %494 = vmatpush1.xpose.msra.mxu0 0.0
    %495 = vmatprep.subr.mxu0 0.0
    %496 = vmatpush1.xpose.msra.mxu0 0.0
    %497 = vmatprep.subr.mxu0 0.0
    %498 = vmatpush1.xpose.msra.mxu0 0.0
    %499 = vmatprep.subr.mxu0 0.0
    %500 = vmatpush1.xpose.msra.mxu0 0.0
    %501 = vmatprep.subr.mxu0 0.0
    %502 = vmatpush1.xpose.msra.mxu0 0.0
    %503 = vmatprep.subr.mxu0 0.0
    %504 = vmatpush1.xpose.msra.mxu0 0.0
    %505 = vmatprep.subr.mxu0 0.0
    %506 = vmatpush1.xpose.msra.mxu0 0.0
    %507 = vmatprep.subr.mxu0 0.0
    %508 = vmatpush1.xpose.msra.mxu0 0.0
    %509 = vmatprep.subr.mxu0 0.0
    %510 = vmatpush1.xpose.msra.mxu0 0.0
    %511 = vmatprep.subr.mxu0 0.0
    %512 = vmatpush1.xpose.msra.mxu0 0.0
    %513 = vmatprep.subr.mxu0 0.0
    %514 = vmatpush1.xpose.msra.mxu0 0.0
    %515 = vmatprep.subr.mxu0 0.0
    %516 = vmatpush1.xpose.msra.mxu0 0.0
    %517 = vmatprep.subr.mxu0 0.0
    %518 = vmatpush1.xpose.msra.mxu0 0.0
    %519 = vmatprep.subr.mxu0 0.0
    %520 = vmatpush1.xpose.msra.mxu0 0.0
    %521 = vmatprep.subr.mxu0 0.0
    %522 = vmatpush1.xpose.msra.mxu0 0.0
    %523 = vmatprep.subr.mxu0 0.0
    %524 = vmatpush1.xpose.msra.mxu0 0.0
    %525 = vmatprep.subr.mxu0 0.0
    %526 = vmatpush1.xpose.msra.mxu0 0.0
    %527 = vmatprep.subr.mxu0 0.0
    %528 = vmatpush1.xpose.msra.mxu0 0.0
    %529 = vmatprep.subr.mxu0 0.0
    %530 = vmatpush1.xpose.msra.mxu0 0.0
    %531 = vmatprep.subr.mxu0 0.0
    %532 = vmatpush1.xpose.msra.mxu0 0.0
    %533 = vmatprep.subr.mxu0 0.0
    %534 = vmatpush1.xpose.msra.mxu0 0.0
    %535 = vmatprep.subr.mxu0 0.0
    %536 = vmatpush1.xpose.msra.mxu0 0.0
    %537 = vmatprep.mubr.f32.mxu0 0.0
    %v538 = vand.u32 %v85, 4294901760
    %v539 = vsub.f32 %v85, %v538
    %v540 = vand.u32 %v539, 4294901760
    %541 = vmatmul.mubr.f32.gmra.mrb[0].mxu0 %v540
    %v542 = vpop.f32.mrb[0].mxu0
    %v543 = vadd.f32 %v427, %v542
    %v544 = vpop.f32.mrb[0].mxu0
    %545 = vmatprep.mubr.f32.mxu0 0.0
    %v546 = vand.u32 %v88, 4294901760
    %v547 = vsub.f32 %v88, %v546
    %v548 = vand.u32 %v547, 4294901760
    %549 = vmatmul.mubr.f32.gmra.mrb[0].mxu0 %v548
    %v550 = vpop.f32.mrb[0].mxu0
    %v551 = vadd.f32 %v434, %v550
    %v552 = vpop.f32.mrb[0].mxu0
    %553 = vmatprep.mubr.f32.mxu0 0.0
    %v554 = vand.u32 %v91, 4294901760
    %v555 = vsub.f32 %v91, %v554
    %v556 = vand.u32 %v555, 4294901760
    %557 = vmatmul.mubr.f32.gmra.mrb[0].mxu0 %v556
    %v558 = vpop.f32.mrb[0].mxu0
    %v559 = vadd.f32 %v441, %v558
    %v560 = vpop.f32.mrb[0].mxu0
    %561 = vmatprep.mubr.f32.mxu0 0.0
    %v562 = vand.u32 %v94, 4294901760
    %v563 = vsub.f32 %v94, %v562
    %v564 = vand.u32 %v563, 4294901760
    %565 = vmatmul.mubr.f32.gmra.mrb[0].mxu0 %v564
    %v566 = vpop.f32.mrb[0].mxu0
    %v567 = vadd.f32 %v448, %v566
    %v568 = vpop.f32.mrb[0].mxu0
    %569 = vmatprep.mubr.f32.mxu0 0.0
    %v570 = vand.u32 %v97, 4294901760
    %v571 = vsub.f32 %v97, %v570
    %v572 = vand.u32 %v571, 4294901760
    %573 = vmatmul.mubr.f32.gmra.mrb[0].mxu0 %v572
    %v574 = vpop.f32.mrb[0].mxu0
    %v575 = vadd.f32 %v455, %v574
    %v576 = vpop.f32.mrb[0].mxu0
    %577 = vmatprep.mubr.f32.mxu0 0.0
    %v578 = vand.u32 %v100, 4294901760
    %v579 = vsub.f32 %v100, %v578
    %v580 = vand.u32 %v579, 4294901760
    %581 = vmatmul.mubr.f32.gmra.mrb[0].mxu0 %v580
    %v582 = vpop.f32.mrb[0].mxu0
    %v583 = vadd.f32 %v462, %v582
    %v584 = vpop.f32.mrb[0].mxu0
    %585 = vmatprep.mubr.f32.mxu0 0.0
    %v586 = vand.u32 %v103, 4294901760
    %v587 = vsub.f32 %v103, %v586
    %v588 = vand.u32 %v587, 4294901760
    %589 = vmatmul.mubr.f32.gmra.mrb[0].mxu0 %v588
    %v590 = vpop.f32.mrb[0].mxu0
    %v591 = vadd.f32 %v469, %v590
    %v592 = vpop.f32.mrb[0].mxu0
    %593 = vdwg.mxu0
    %594 = vmatprep.subr.mxu0 0.0
    %v595 = vand.u32 %v106, 4294901760
    %v596 = vsub.f32 %v106, %v595
    %v597 = vand.u32 %v596, 4294901760
    %598 = vmatpush1.xpose.msra.mxu0 %v597
    %599 = vmatprep.subr.mxu0 0.0
    %600 = vmatpush1.xpose.msra.mxu0 0.0
    %601 = vmatprep.subr.mxu0 0.0
    %602 = vmatpush1.xpose.msra.mxu0 0.0
    %603 = vmatprep.subr.mxu0 0.0
    %604 = vmatpush1.xpose.msra.mxu0 0.0
    %605 = vmatprep.subr.mxu0 0.0
    %606 = vmatpush1.xpose.msra.mxu0 0.0
    %607 = vmatprep.subr.mxu0 0.0
    %608 = vmatpush1.xpose.msra.mxu0 0.0
    %609 = vmatprep.subr.mxu0 0.0
    %610 = vmatpush1.xpose.msra.mxu0 0.0
    %611 = vmatprep.subr.mxu0 0.0
    %612 = vmatpush1.xpose.msra.mxu0 0.0
    %613 = vmatprep.subr.mxu0 0.0
    %614 = vmatpush1.xpose.msra.mxu0 0.0
    %615 = vmatprep.subr.mxu0 0.0
    %616 = vmatpush1.xpose.msra.mxu0 0.0
    %617 = vmatprep.subr.mxu0 0.0
    %618 = vmatpush1.xpose.msra.mxu0 0.0
    %619 = vmatprep.subr.mxu0 0.0
    %620 = vmatpush1.xpose.msra.mxu0 0.0
    %621 = vmatprep.subr.mxu0 0.0
    %622 = vmatpush1.xpose.msra.mxu0 0.0
    %623 = vmatprep.subr.mxu0 0.0
    %624 = vmatpush1.xpose.msra.mxu0 0.0
    %625 = vmatprep.subr.mxu0 0.0
    %626 = vmatpush1.xpose.msra.mxu0 0.0
    %627 = vmatprep.subr.mxu0 0.0
    %628 = vmatpush1.xpose.msra.mxu0 0.0
    %629 = vmatprep.subr.mxu0 0.0
    %630 = vmatpush1.xpose.msra.mxu0 0.0
    %631 = vmatprep.subr.mxu0 0.0
    %632 = vmatpush1.xpose.msra.mxu0 0.0
    %633 = vmatprep.subr.mxu0 0.0
    %634 = vmatpush1.xpose.msra.mxu0 0.0
    %635 = vmatprep.subr.mxu0 0.0
    %636 = vmatpush1.xpose.msra.mxu0 0.0
    %637 = vmatprep.subr.mxu0 0.0
    %638 = vmatpush1.xpose.msra.mxu0 0.0
    %639 = vmatprep.subr.mxu0 0.0
    %640 = vmatpush1.xpose.msra.mxu0 0.0
    %641 = vmatprep.subr.mxu0 0.0
    %642 = vmatpush1.xpose.msra.mxu0 0.0
    %643 = vmatprep.subr.mxu0 0.0
    %644 = vmatpush1.xpose.msra.mxu0 0.0
    %645 = vmatprep.subr.mxu0 0.0
    %646 = vmatpush1.xpose.msra.mxu0 0.0
    %647 = vmatprep.subr.mxu0 0.0
    %648 = vmatpush1.xpose.msra.mxu0 0.0
    %649 = vmatprep.subr.mxu0 0.0
    %650 = vmatpush1.xpose.msra.mxu0 0.0
    %651 = vmatprep.subr.mxu0 0.0
    %652 = vmatpush1.xpose.msra.mxu0 0.0
    %653 = vmatprep.subr.mxu0 0.0
    %654 = vmatpush1.xpose.msra.mxu0 0.0
    %655 = vmatprep.subr.mxu0 0.0
    %656 = vmatpush1.xpose.msra.mxu0 0.0
    %657 = vmatprep.subr.mxu0 0.0
    %658 = vmatpush1.xpose.msra.mxu0 0.0
    %659 = vmatprep.subr.mxu0 0.0
    %660 = vmatpush1.xpose.msra.mxu0 0.0
    %661 = vmatprep.mubr.f32.mxu0 0.0
    %v662 = vand.u32 %v85, 4294901760
    %663 = vmatmul.mubr.f32.gmra.mrb[0].mxu0 %v662
    %v664 = vpop.f32.mrb[0].mxu0
    %v665 = vadd.f32 %v543, %v664
    %v666 = vpop.f32.mrb[0].mxu0
    %667 = vmatprep.mubr.f32.mxu0 0.0
    %v668 = vand.u32 %v88, 4294901760
    %669 = vmatmul.mubr.f32.gmra.mrb[0].mxu0 %v668
    %v670 = vpop.f32.mrb[0].mxu0
    %v671 = vadd.f32 %v551, %v670
    %v672 = vpop.f32.mrb[0].mxu0
    %673 = vmatprep.mubr.f32.mxu0 0.0
    %v674 = vand.u32 %v91, 4294901760
    %675 = vmatmul.mubr.f32.gmra.mrb[0].mxu0 %v674
    %v676 = vpop.f32.mrb[0].mxu0
    %v677 = vadd.f32 %v559, %v676
    %v678 = vpop.f32.mrb[0].mxu0
    %679 = vmatprep.mubr.f32.mxu0 0.0
    %v680 = vand.u32 %v94, 4294901760
    %681 = vmatmul.mubr.f32.gmra.mrb[0].mxu0 %v680
    %v682 = vpop.f32.mrb[0].mxu0
    %v683 = vadd.f32 %v567, %v682
    %v684 = vpop.f32.mrb[0].mxu0
    %685 = vmatprep.mubr.f32.mxu0 0.0
    %v686 = vand.u32 %v97, 4294901760
    %687 = vmatmul.mubr.f32.gmra.mrb[0].mxu0 %v686
    %v688 = vpop.f32.mrb[0].mxu0
    %v689 = vadd.f32 %v575, %v688
    %v690 = vpop.f32.mrb[0].mxu0
    %691 = vmatprep.mubr.f32.mxu0 0.0
    %v692 = vand.u32 %v100, 4294901760
    %693 = vmatmul.mubr.f32.gmra.mrb[0].mxu0 %v692
    %v694 = vpop.f32.mrb[0].mxu0
    %v695 = vadd.f32 %v583, %v694
    %v696 = vpop.f32.mrb[0].mxu0
    %697 = vmatprep.mubr.f32.mxu0 0.0
    %v698 = vand.u32 %v103, 4294901760
    %699 = vmatmul.mubr.f32.gmra.mrb[0].mxu0 %v698
    %v700 = vpop.f32.mrb[0].mxu0
    %v701 = vadd.f32 %v591, %v700
    %v702 = vpop.f32.mrb[0].mxu0
    %703 = vdwg.mxu0
    %704 = vmatprep.subr.mxu0 0.0
    %v705 = vand.u32 %v106, 4294901760
    %706 = vmatpush1.xpose.msra.mxu0 %v705
    %707 = vmatprep.subr.mxu0 0.0
    %708 = vmatpush1.xpose.msra.mxu0 0.0
    %709 = vmatprep.subr.mxu0 0.0
    %710 = vmatpush1.xpose.msra.mxu0 0.0
    %711 = vmatprep.subr.mxu0 0.0
    %712 = vmatpush1.xpose.msra.mxu0 0.0
    %713 = vmatprep.subr.mxu0 0.0
    %714 = vmatpush1.xpose.msra.mxu0 0.0
    %715 = vmatprep.subr.mxu0 0.0
    %716 = vmatpush1.xpose.msra.mxu0 0.0
    %717 = vmatprep.subr.mxu0 0.0
    %718 = vmatpush1.xpose.msra.mxu0 0.0
    %719 = vmatprep.subr.mxu0 0.0
    %720 = vmatpush1.xpose.msra.mxu0 0.0
    %721 = vmatprep.subr.mxu0 0.0
    %722 = vmatpush1.xpose.msra.mxu0 0.0
    %723 = vmatprep.subr.mxu0 0.0
    %724 = vmatpush1.xpose.msra.mxu0 0.0
    %725 = vmatprep.subr.mxu0 0.0
    %726 = vmatpush1.xpose.msra.mxu0 0.0
    %727 = vmatprep.subr.mxu0 0.0
    %728 = vmatpush1.xpose.msra.mxu0 0.0
    %729 = vmatprep.subr.mxu0 0.0
    %730 = vmatpush1.xpose.msra.mxu0 0.0
    %731 = vmatprep.subr.mxu0 0.0
    %732 = vmatpush1.xpose.msra.mxu0 0.0
    %733 = vmatprep.subr.mxu0 0.0
    %734 = vmatpush1.xpose.msra.mxu0 0.0
    %735 = vmatprep.subr.mxu0 0.0
    %736 = vmatpush1.xpose.msra.mxu0 0.0
    %737 = vmatprep.subr.mxu0 0.0
    %738 = vmatpush1.xpose.msra.mxu0 0.0
    %739 = vmatprep.subr.mxu0 0.0
    %740 = vmatpush1.xpose.msra.mxu0 0.0
    %741 = vmatprep.subr.mxu0 0.0
    %742 = vmatpush1.xpose.msra.mxu0 0.0
    %743 = vmatprep.subr.mxu0 0.0
    %744 = vmatpush1.xpose.msra.mxu0 0.0
    %745 = vmatprep.subr.mxu0 0.0
    %746 = vmatpush1.xpose.msra.mxu0 0.0
    %747 = vmatprep.subr.mxu0 0.0
    %748 = vmatpush1.xpose.msra.mxu0 0.0
    %749 = vmatprep.subr.mxu0 0.0
    %750 = vmatpush1.xpose.msra.mxu0 0.0
    %751 = vmatprep.subr.mxu0 0.0
    %752 = vmatpush1.xpose.msra.mxu0 0.0
    %753 = vmatprep.subr.mxu0 0.0
    %754 = vmatpush1.xpose.msra.mxu0 0.0
    %755 = vmatprep.subr.mxu0 0.0
    %756 = vmatpush1.xpose.msra.mxu0 0.0
    %757 = vmatprep.subr.mxu0 0.0
    %758 = vmatpush1.xpose.msra.mxu0 0.0
    %759 = vmatprep.subr.mxu0 0.0
    %760 = vmatpush1.xpose.msra.mxu0 0.0
    %761 = vmatprep.subr.mxu0 0.0
    %762 = vmatpush1.xpose.msra.mxu0 0.0
    %763 = vmatprep.subr.mxu0 0.0
    %764 = vmatpush1.xpose.msra.mxu0 0.0
    %765 = vmatprep.subr.mxu0 0.0
    %766 = vmatpush1.xpose.msra.mxu0 0.0
    %767 = vmatprep.subr.mxu0 0.0
    %768 = vmatpush1.xpose.msra.mxu0 0.0
    %769 = vmatprep.mubr.f32.mxu0 0.0
    %v770 = vand.u32 %v85, 4294901760
    %771 = vmatmul.mubr.f32.gmra.mrb[0].mxu0 %v770
    %v772 = vpop.f32.mrb[0].mxu0
    %v773 = vadd.f32 %v665, %v772
    %v774 = vpop.f32.mrb[0].mxu0
    %775 = vmatprep.mubr.f32.mxu0 0.0
    %v776 = vand.u32 %v88, 4294901760
    %777 = vmatmul.mubr.f32.gmra.mrb[0].mxu0 %v776
    %v778 = vpop.f32.mrb[0].mxu0
    %v779 = vadd.f32 %v671, %v778
    %v780 = vpop.f32.mrb[0].mxu0
    %781 = vmatprep.mubr.f32.mxu0 0.0
    %v782 = vand.u32 %v91, 4294901760
    %783 = vmatmul.mubr.f32.gmra.mrb[0].mxu0 %v782
    %v784 = vpop.f32.mrb[0].mxu0
    %v785 = vadd.f32 %v677, %v784
    %v786 = vpop.f32.mrb[0].mxu0
    %787 = vmatprep.mubr.f32.mxu0 0.0
    %v788 = vand.u32 %v94, 4294901760
    %789 = vmatmul.mubr.f32.gmra.mrb[0].mxu0 %v788
    %v790 = vpop.f32.mrb[0].mxu0
    %v791 = vadd.f32 %v683, %v790
    %v792 = vpop.f32.mrb[0].mxu0
    %793 = vmatprep.mubr.f32.mxu0 0.0
    %v794 = vand.u32 %v97, 4294901760
    %795 = vmatmul.mubr.f32.gmra.mrb[0].mxu0 %v794
    %v796 = vpop.f32.mrb[0].mxu0
    %v797 = vadd.f32 %v689, %v796
    %v798 = vpop.f32.mrb[0].mxu0
    %799 = vmatprep.mubr.f32.mxu0 0.0
    %v800 = vand.u32 %v100, 4294901760
    %801 = vmatmul.mubr.f32.gmra.mrb[0].mxu0 %v800
    %v802 = vpop.f32.mrb[0].mxu0
    %v803 = vadd.f32 %v695, %v802
    %v804 = vpop.f32.mrb[0].mxu0
    %805 = vmatprep.mubr.f32.mxu0 0.0
    %v806 = vand.u32 %v103, 4294901760
    %807 = vmatmul.mubr.f32.gmra.mrb[0].mxu0 %v806
    %v808 = vpop.f32.mrb[0].mxu0
    %v809 = vadd.f32 %v701, %v808
    %v810 = vpop.f32.mrb[0].mxu0
    %811 = vdwg.mxu0
    %v812 = vtanh.pop %v773
    %v813 = vtanh.pop %v779
    %v814 = vtanh.pop %v785
    %v815 = vtanh.pop %v791
    %v816 = vtanh.pop %v797
    %v817 = vtanh.pop %v803
    %v818 = vtanh.pop %v809
    %v819 = vld [vmem:[%s3] sm:$0xff]
    %v820 = vld [vmem:[%s3 + $0x8] sm:$0xff]
    %v821 = vld [vmem:[%s3 + $0x10] sm:$0xff]
    %v822 = vld [vmem:[%s3 + $0x18] sm:$0x3f]
    %v823 = vld [vmem:[%s4] sm:$0xff]
    %v824 = vld [vmem:[%s4 + $0x8] sm:$0xff]
    %v825 = vld [vmem:[%s4 + $0x10] sm:$0xff]
    %v826 = vld [vmem:[%s4 + $0x18] sm:$0x3f]
    %828 = vset.pattern.permute.xlu0 0
    %829 = vperm.xlu0 %828, %v823
    %v830 = vpop.permute.xlu0 %829
    %833 = vset.pattern.permute.xlu0 0
    %834 = vperm.xlu0 %833, %v824
    %v835 = vpop.permute.xlu0 %834
    %838 = vset.pattern.permute.xlu0 0
    %839 = vperm.xlu0 %838, %v825
    %v840 = vpop.permute.xlu0 %839
    %843 = vset.pattern.permute.xlu0 0
    %844 = vperm.xlu0 %843, %v826
    %v845 = vpop.permute.xlu0 %844
    %vm847 = vcmask 408576
    %v849 = vsel %vm847, %v819, 0
    %v852 = vsel %vm847, %v820, 0
    %v855 = vsel %vm847, %v821, 0
    %v858 = vsel %vm847, %v822, 0
    %vm860 = vcmask 1041408
    %v862 = vsel %vm860, %v818, 0
    %864 = vmatprep.subr.mxu0 0.0
    %v865 = vand.u32 %v812, 4294901760
    %866 = vmatpush1.msra.mxu0 %v865
    %867 = vmatprep.subr.mxu0 0.0
    %v868 = vand.u32 %v813, 4294901760
    %869 = vmatpush1.msra.mxu0 %v868
    %870 = vmatprep.subr.mxu0 0.0
    %v871 = vand.u32 %v814, 4294901760
    %872 = vmatpush1.msra.mxu0 %v871
    %873 = vmatprep.subr.mxu0 0.0
    %v874 = vand.u32 %v815, 4294901760
    %875 = vmatpush1.msra.mxu0 %v874
    %876 = vmatprep.subr.mxu0 0.0
    %v877 = vand.u32 %v816, 4294901760
    %878 = vmatpush1.msra.mxu0 %v877
    %879 = vmatprep.subr.mxu0 0.0
    %v880 = vand.u32 %v817, 4294901760
    %881 = vmatpush1.msra.mxu0 %v880
    %882 = vmatprep.subr.mxu0 0.0
    %v883 = vand.u32 %v862, 4294901760
    %884 = vmatpush1.msra.mxu0 %v883
    %885 = vmatprep.subr.mxu0 0.0
    %886 = vmatpush1.msra.mxu0 0.0
    %887 = vmatprep.subr.mxu0 0.0
    %888 = vmatpush1.msra.mxu0 0.0
    %889 = vmatprep.subr.mxu0 0.0
    %890 = vmatpush1.msra.mxu0 0.0
    %891 = vmatprep.subr.mxu0 0.0
    %892 = vmatpush1.msra.mxu0 0.0
    %893 = vmatprep.subr.mxu0 0.0
    %894 = vmatpush1.msra.mxu0 0.0
    %895 = vmatprep.subr.mxu0 0.0
    %896 = vmatpush1.msra.mxu0 0.0
    %897 = vmatprep.subr.mxu0 0.0
    %898 = vmatpush1.msra.mxu0 0.0
    %899 = vmatprep.subr.mxu0 0.0
    %900 = vmatpush1.msra.mxu0 0.0
    %901 = vmatprep.subr.mxu0 0.0
    %902 = vmatpush1.msra.mxu0 0.0
    %903 = vmatprep.subr.mxu0 0.0
    %904 = vmatpush1.msra.mxu0 0.0
    %905 = vmatprep.subr.mxu0 0.0
    %906 = vmatpush1.msra.mxu0 0.0
    %907 = vmatprep.subr.mxu0 0.0
    %908 = vmatpush1.msra.mxu0 0.0
    %909 = vmatprep.subr.mxu0 0.0
    %910 = vmatpush1.msra.mxu0 0.0
    %911 = vmatprep.subr.mxu0 0.0
    %912 = vmatpush1.msra.mxu0 0.0
    %913 = vmatprep.subr.mxu0 0.0
    %914 = vmatpush1.msra.mxu0 0.0
    %915 = vmatprep.subr.mxu0 0.0
    %916 = vmatpush1.msra.mxu0 0.0
    %917 = vmatprep.subr.mxu0 0.0
    %918 = vmatpush1.msra.mxu0 0.0
    %919 = vmatprep.subr.mxu0 0.0
    %920 = vmatpush1.msra.mxu0 0.0
    %921 = vmatprep.subr.mxu0 0.0
    %922 = vmatpush1.msra.mxu0 0.0
    %923 = vmatprep.subr.mxu0 0.0
    %924 = vmatpush1.msra.mxu0 0.0
    %925 = vmatprep.subr.mxu0 0.0
    %926 = vmatpush1.msra.mxu0 0.0
    %927 = vmatprep.subr.mxu0 0.0
    %928 = vmatpush1.msra.mxu0 0.0
    %929 = vmatprep.subr.mxu0 0.0
    %930 = vmatpush1.msra.mxu0 0.0
    %931 = vmatprep.subr.mxu0 0.0
    %932 = vmatpush1.msra.mxu0 0.0
    %933 = vmatprep.subr.mxu0 0.0
    %934 = vmatpush1.msra.mxu0 0.0
    %935 = vmatprep.mubr.f32.mxu0 0.0
    %v936 = vand.u32 %v849, 4294901760
    %v937 = vsub.f32 %v849, %v936
    %v938 = vand.u32 %v937, 4294901760
    %v939 = vsub.f32 %v937, %v938
    %v940 = vand.u32 %v939, 4294901760
    %941 = vmatmul.mubr.f32.gmra.mrb[0].mxu0 %v940
    %v942 = vpop.f32.mrb[0].mxu0
    %v943 = vadd.f32 %v830, %v942
    %v944 = vpop.f32.mrb[0].mxu0
    %945 = vmatprep.mubr.f32.mxu0 0.0
    %v946 = vand.u32 %v852, 4294901760
    %v947 = vsub.f32 %v852, %v946
    %v948 = vand.u32 %v947, 4294901760
    %v949 = vsub.f32 %v947, %v948
    %v950 = vand.u32 %v949, 4294901760
    %951 = vmatmul.mubr.f32.gmra.mrb[0].mxu0 %v950
    %v952 = vpop.f32.mrb[0].mxu0
    %v953 = vadd.f32 %v835, %v952
    %v954 = vpop.f32.mrb[0].mxu0
    %955 = vmatprep.mubr.f32.mxu0 0.0
    %v956 = vand.u32 %v855, 4294901760
    %v957 = vsub.f32 %v855, %v956
    %v958 = vand.u32 %v957, 4294901760
    %v959 = vsub.f32 %v957, %v958
    %v960 = vand.u32 %v959, 4294901760
    %961 = vmatmul.mubr.f32.gmra.mrb[0].mxu0 %v960
    %v962 = vpop.f32.mrb[0].mxu0
    %v963 = vadd.f32 %v840, %v962
    %v964 = vpop.f32.mrb[0].mxu0
    %965 = vmatprep.mubr.f32.mxu0 0.0
    %v966 = vand.u32 %v858, 4294901760
    %v967 = vsub.f32 %v858, %v966
    %v968 = vand.u32 %v967, 4294901760
    %v969 = vsub.f32 %v967, %v968
    %v970 = vand.u32 %v969, 4294901760
    %971 = vmatmul.mubr.f32.gmra.mrb[0].mxu0 %v970
    %v972 = vpop.f32.mrb[0].mxu0
    %v973 = vadd.f32 %v845, %v972
    %v974 = vpop.f32.mrb[0].mxu0
    %975 = vdwg.mxu0
    %976 = vmatprep.subr.mxu0 0.0
    %v977 = vand.u32 %v812, 4294901760
    %v978 = vsub.f32 %v812, %v977
    %v979 = vand.u32 %v978, 4294901760
    %v980 = vsub.f32 %v978, %v979
    %v981 = vand.u32 %v980, 4294901760
    %982 = vmatpush1.msra.mxu0 %v981
    %983 = vmatprep.subr.mxu0 0.0
    %v984 = vand.u32 %v813, 4294901760
    %v985 = vsub.f32 %v813, %v984
    %v986 = vand.u32 %v985, 4294901760
    %v987 = vsub.f32 %v985, %v986
    %v988 = vand.u32 %v987, 4294901760
    %989 = vmatpush1.msra.mxu0 %v988
    %990 = vmatprep.subr.mxu0 0.0
    %v991 = vand.u32 %v814, 4294901760
    %v992 = vsub.f32 %v814, %v991
    %v993 = vand.u32 %v992, 4294901760
    %v994 = vsub.f32 %v992, %v993
    %v995 = vand.u32 %v994, 4294901760
    %996 = vmatpush1.msra.mxu0 %v995
    %997 = vmatprep.subr.mxu0 0.0
    %v998 = vand.u32 %v815, 4294901760
    %v999 = vsub.f32 %v815, %v998
    %v1000 = vand.u32 %v999, 4294901760
    %v1001 = vsub.f32 %v999, %v1000
    %v1002 = vand.u32 %v1001, 4294901760
    %1003 = vmatpush1.msra.mxu0 %v1002
    %1004 = vmatprep.subr.mxu0 0.0
    %v1005 = vand.u32 %v816, 4294901760
    %v1006 = vsub.f32 %v816, %v1005
    %v1007 = vand.u32 %v1006, 4294901760
    %v1008 = vsub.f32 %v1006, %v1007
    %v1009 = vand.u32 %v1008, 4294901760
    %1010 = vmatpush1.msra.mxu0 %v1009
    %1011 = vmatprep.subr.mxu0 0.0
    %v1012 = vand.u32 %v817, 4294901760
    %v1013 = vsub.f32 %v817, %v1012
    %v1014 = vand.u32 %v1013, 4294901760
    %v1015 = vsub.f32 %v1013, %v1014
    %v1016 = vand.u32 %v1015, 4294901760
    %1017 = vmatpush1.msra.mxu0 %v1016
    %1018 = vmatprep.subr.mxu0 0.0
    %v1019 = vand.u32 %v862, 4294901760
    %v1020 = vsub.f32 %v862, %v1019
    %v1021 = vand.u32 %v1020, 4294901760
    %v1022 = vsub.f32 %v1020, %v1021
    %v1023 = vand.u32 %v1022, 4294901760
    %1024 = vmatpush1.msra.mxu0 %v1023
    %1025 = vmatprep.subr.mxu0 0.0
    %1026 = vmatpush1.msra.mxu0 0.0
    %1027 = vmatprep.subr.mxu0 0.0
    %1028 = vmatpush1.msra.mxu0 0.0
    %1029 = vmatprep.subr.mxu0 0.0
    %1030 = vmatpush1.msra.mxu0 0.0
    %1031 = vmatprep.subr.mxu0 0.0
    %1032 = vmatpush1.msra.mxu0 0.0
    %1033 = vmatprep.subr.mxu0 0.0
    %1034 = vmatpush1.msra.mxu0 0.0
    %1035 = vmatprep.subr.mxu0 0.0
    %1036 = vmatpush1.msra.mxu0 0.0
    %1037 = vmatprep.subr.mxu0 0.0
    %1038 = vmatpush1.msra.mxu0 0.0
    %1039 = vmatprep.subr.mxu0 0.0
    %1040 = vmatpush1.msra.mxu0 0.0
    %1041 = vmatprep.subr.mxu0 0.0
    %1042 = vmatpush1.msra.mxu0 0.0
    %1043 = vmatprep.subr.mxu0 0.0
    %1044 = vmatpush1.msra.mxu0 0.0
    %1045 = vmatprep.subr.mxu0 0.0
    %1046 = vmatpush1.msra.mxu0 0.0
    %1047 = vmatprep.subr.mxu0 0.0
    %1048 = vmatpush1.msra.mxu0 0.0
    %1049 = vmatprep.subr.mxu0 0.0
    %1050 = vmatpush1.msra.mxu0 0.0
    %1051 = vmatprep.subr.mxu0 0.0
    %1052 = vmatpush1.msra.mxu0 0.0
    %1053 = vmatprep.subr.mxu0 0.0
    %1054 = vmatpush1.msra.mxu0 0.0
    %1055 = vmatprep.subr.mxu0 0.0
    %1056 = vmatpush1.msra.mxu0 0.0
    %1057 = vmatprep.subr.mxu0 0.0
    %1058 = vmatpush1.msra.mxu0 0.0
    %1059 = vmatprep.subr.mxu0 0.0
    %1060 = vmatpush1.msra.mxu0 0.0
    %1061 = vmatprep.subr.mxu0 0.0
    %1062 = vmatpush1.msra.mxu0 0.0
    %1063 = vmatprep.subr.mxu0 0.0
    %1064 = vmatpush1.msra.mxu0 0.0
    %1065 = vmatprep.subr.mxu0 0.0
    %1066 = vmatpush1.msra.mxu0 0.0
    %1067 = vmatprep.subr.mxu0 0.0
    %1068 = vmatpush1.msra.mxu0 0.0
    %1069 = vmatprep.subr.mxu0 0.0
    %1070 = vmatpush1.msra.mxu0 0.0
    %1071 = vmatprep.subr.mxu0 0.0
    %1072 = vmatpush1.msra.mxu0 0.0
    %1073 = vmatprep.subr.mxu0 0.0
    %1074 = vmatpush1.msra.mxu0 0.0
    %1075 = vmatprep.mubr.f32.mxu0 0.0
    %v1076 = vand.u32 %v849, 4294901760
    %1077 = vmatmul.mubr.f32.gmra.mrb[0].mxu0 %v1076
    %v1078 = vpop.f32.mrb[0].mxu0
    %v1079 = vadd.f32 %v943, %v1078
    %v1080 = vpop.f32.mrb[0].mxu0
    %1081 = vmatprep.mubr.f32.mxu0 0.0
    %v1082 = vand.u32 %v852, 4294901760
    %1083 = vmatmul.mubr.f32.gmra.mrb[0].mxu0 %v1082
    %v1084 = vpop.f32.mrb[0].mxu0
    %v1085 = vadd.f32 %v953, %v1084
    %v1086 = vpop.f32.mrb[0].mxu0
    %1087 = vmatprep.mubr.f32.mxu0 0.0
    %v1088 = vand.u32 %v855, 4294901760
    %1089 = vmatmul.mubr.f32.gmra.mrb[0].mxu0 %v1088
    %v1090 = vpop.f32.mrb[0].mxu0
    %v1091 = vadd.f32 %v963, %v1090
    %v1092 = vpop.f32.mrb[0].mxu0
    %1093 = vmatprep.mubr.f32.mxu0 0.0
    %v1094 = vand.u32 %v858, 4294901760
    %1095 = vmatmul.mubr.f32.gmra.mrb[0].mxu0 %v1094
    %v1096 = vpop.f32.mrb[0].mxu0
    %v1097 = vadd.f32 %v973, %v1096
    %v1098 = vpop.f32.mrb[0].mxu0
    %1099 = vdwg.mxu0
    %1100 = vmatprep.subr.mxu0 0.0
    %v1101 = vand.u32 %v812, 4294901760
    %v1102 = vsub.f32 %v812, %v1101
    %1103 = vmatpush1.msra.mxu0 %v1102
    %1104 = vmatprep.subr.mxu0 0.0
    %v1105 = vand.u32 %v813, 4294901760
    %v1106 = vsub.f32 %v813, %v1105
    %1107 = vmatpush1.msra.mxu0 %v1106
    %1108 = vmatprep.subr.mxu0 0.0
    %v1109 = vand.u32 %v814, 4294901760
    %v1110 = vsub.f32 %v814, %v1109
    %1111 = vmatpush1.msra.mxu0 %v1110
    %1112 = vmatprep.subr.mxu0 0.0
    %v1113 = vand.u32 %v815, 4294901760
    %v1114 = vsub.f32 %v815, %v1113
    %1115 = vmatpush1.msra.mxu0 %v1114
    %1116 = vmatprep.subr.mxu0 0.0
    %v1117 = vand.u32 %v816, 4294901760
    %v1118 = vsub.f32 %v816, %v1117
    %1119 = vmatpush1.msra.mxu0 %v1118
    %1120 = vmatprep.subr.mxu0 0.0
    %v1121 = vand.u32 %v817, 4294901760
    %v1122 = vsub.f32 %v817, %v1121
    %1123 = vmatpush1.msra.mxu0 %v1122
    %1124 = vmatprep.subr.mxu0 0.0
    %v1125 = vand.u32 %v862, 4294901760
    %v1126 = vsub.f32 %v862, %v1125
    %1127 = vmatpush1.msra.mxu0 %v1126
    %1128 = vmatprep.subr.mxu0 0.0
    %1129 = vmatpush1.msra.mxu0 0.0
    %1130 = vmatprep.subr.mxu0 0.0
    %1131 = vmatpush1.msra.mxu0 0.0
    %1132 = vmatprep.subr.mxu0 0.0
    %1133 = vmatpush1.msra.mxu0 0.0
    %1134 = vmatprep.subr.mxu0 0.0
    %1135 = vmatpush1.msra.mxu0 0.0
    %1136 = vmatprep.subr.mxu0 0.0
    %1137 = vmatpush1.msra.mxu0 0.0
    %1138 = vmatprep.subr.mxu0 0.0
    %1139 = vmatpush1.msra.mxu0 0.0
    %1140 = vmatprep.subr.mxu0 0.0
    %1141 = vmatpush1.msra.mxu0 0.0
    %1142 = vmatprep.subr.mxu0 0.0
    %1143 = vmatpush1.msra.mxu0 0.0
    %1144 = vmatprep.subr.mxu0 0.0
    %1145 = vmatpush1.msra.mxu0 0.0
    %1146 = vmatprep.subr.mxu0 0.0
    %1147 = vmatpush1.msra.mxu0 0.0
    %1148 = vmatprep.subr.mxu0 0.0
    %1149 = vmatpush1.msra.mxu0 0.0
    %1150 = vmatprep.subr.mxu0 0.0
    %1151 = vmatpush1.msra.mxu0 0.0
    %1152 = vmatprep.subr.mxu0 0.0
    %1153 = vmatpush1.msra.mxu0 0.0
    %1154 = vmatprep.subr.mxu0 0.0
    %1155 = vmatpush1.msra.mxu0 0.0
    %1156 = vmatprep.subr.mxu0 0.0
    %1157 = vmatpush1.msra.mxu0 0.0
    %1158 = vmatprep.subr.mxu0 0.0
    %1159 = vmatpush1.msra.mxu0 0.0
    %1160 = vmatprep.subr.mxu0 0.0
    %1161 = vmatpush1.msra.mxu0 0.0
    %1162 = vmatprep.subr.mxu0 0.0
    %1163 = vmatpush1.msra.mxu0 0.0
    %1164 = vmatprep.subr.mxu0 0.0
    %1165 = vmatpush1.msra.mxu0 0.0
    %1166 = vmatprep.subr.mxu0 0.0
    %1167 = vmatpush1.msra.mxu0 0.0
    %1168 = vmatprep.subr.mxu0 0.0
    %1169 = vmatpush1.msra.mxu0 0.0
    %1170 = vmatprep.subr.mxu0 0.0
    %1171 = vmatpush1.msra.mxu0 0.0
    %1172 = vmatprep.subr.mxu0 0.0
    %1173 = vmatpush1.msra.mxu0 0.0
    %1174 = vmatprep.subr.mxu0 0.0
    %1175 = vmatpush1.msra.mxu0 0.0
    %1176 = vmatprep.subr.mxu0 0.0
    %1177 = vmatpush1.msra.mxu0 0.0
    %1178 = vmatprep.mubr.f32.mxu0 0.0
    %v1179 = vand.u32 %v849, 4294901760
    %v1180 = vsub.f32 %v849, %v1179
    %1181 = vmatmul.mubr.f32.gmra.mrb[0].mxu0 %v1180
    %v1182 = vpop.f32.mrb[0].mxu0
    %v1183 = vadd.f32 %v1079, %v1182
    %v1184 = vpop.f32.mrb[0].mxu0
    %1185 = vmatprep.mubr.f32.mxu0 0.0
    %v1186 = vand.u32 %v852, 4294901760
    %v1187 = vsub.f32 %v852, %v1186
    %1188 = vmatmul.mubr.f32.gmra.mrb[0].mxu0 %v1187
    %v1189 = vpop.f32.mrb[0].mxu0
    %v1190 = vadd.f32 %v1085, %v1189
    %v1191 = vpop.f32.mrb[0].mxu0
    %1192 = vmatprep.mubr.f32.mxu0 0.0
    %v1193 = vand.u32 %v855, 4294901760
    %v1194 = vsub.f32 %v855, %v1193
    %1195 = vmatmul.mubr.f32.gmra.mrb[0].mxu0 %v1194
    %v1196 = vpop.f32.mrb[0].mxu0
    %v1197 = vadd.f32 %v1091, %v1196
    %v1198 = vpop.f32.mrb[0].mxu0
    %1199 = vmatprep.mubr.f32.mxu0 0.0
    %v1200 = vand.u32 %v858, 4294901760
    %v1201 = vsub.f32 %v858, %v1200
    %1202 = vmatmul.mubr.f32.gmra.mrb[0].mxu0 %v1201
    %v1203 = vpop.f32.mrb[0].mxu0
    %v1204 = vadd.f32 %v1097, %v1203
    %v1205 = vpop.f32.mrb[0].mxu0
    %1206 = vdwg.mxu0
    %1207 = vmatprep.subr.mxu0 0.0
    %v1208 = vand.u32 %v812, 4294901760
    %1209 = vmatpush1.msra.mxu0 %v1208
    %1210 = vmatprep.subr.mxu0 0.0
    %v1211 = vand.u32 %v813, 4294901760
    %1212 = vmatpush1.msra.mxu0 %v1211
    %1213 = vmatprep.subr.mxu0 0.0
    %v1214 = vand.u32 %v814, 4294901760
    %1215 = vmatpush1.msra.mxu0 %v1214
    %1216 = vmatprep.subr.mxu0 0.0
    %v1217 = vand.u32 %v815, 4294901760
    %1218 = vmatpush1.msra.mxu0 %v1217
    %1219 = vmatprep.subr.mxu0 0.0
    %v1220 = vand.u32 %v816, 4294901760
    %1221 = vmatpush1.msra.mxu0 %v1220
    %1222 = vmatprep.subr.mxu0 0.0
    %v1223 = vand.u32 %v817, 4294901760
    %1224 = vmatpush1.msra.mxu0 %v1223
    %1225 = vmatprep.subr.mxu0 0.0
    %v1226 = vand.u32 %v862, 4294901760
    %1227 = vmatpush1.msra.mxu0 %v1226
    %1228 = vmatprep.subr.mxu0 0.0
    %1229 = vmatpush1.msra.mxu0 0.0
    %1230 = vmatprep.subr.mxu0 0.0
    %1231 = vmatpush1.msra.mxu0 0.0
    %1232 = vmatprep.subr.mxu0 0.0
    %1233 = vmatpush1.msra.mxu0 0.0
    %1234 = vmatprep.subr.mxu0 0.0
    %1235 = vmatpush1.msra.mxu0 0.0
    %1236 = vmatprep.subr.mxu0 0.0
    %1237 = vmatpush1.msra.mxu0 0.0
    %1238 = vmatprep.subr.mxu0 0.0
    %1239 = vmatpush1.msra.mxu0 0.0
    %1240 = vmatprep.subr.mxu0 0.0
    %1241 = vmatpush1.msra.mxu0 0.0
    %1242 = vmatprep.subr.mxu0 0.0
    %1243 = vmatpush1.msra.mxu0 0.0
    %1244 = vmatprep.subr.mxu0 0.0
    %1245 = vmatpush1.msra.mxu0 0.0
    %1246 = vmatprep.subr.mxu0 0.0
    %1247 = vmatpush1.msra.mxu0 0.0
    %1248 = vmatprep.subr.mxu0 0.0
    %1249 = vmatpush1.msra.mxu0 0.0
    %1250 = vmatprep.subr.mxu0 0.0
    %1251 = vmatpush1.msra.mxu0 0.0
    %1252 = vmatprep.subr.mxu0 0.0
    %1253 = vmatpush1.msra.mxu0 0.0
    %1254 = vmatprep.subr.mxu0 0.0
    %1255 = vmatpush1.msra.mxu0 0.0
    %1256 = vmatprep.subr.mxu0 0.0
    %1257 = vmatpush1.msra.mxu0 0.0
    %1258 = vmatprep.subr.mxu0 0.0
    %1259 = vmatpush1.msra.mxu0 0.0
    %1260 = vmatprep.subr.mxu0 0.0
    %1261 = vmatpush1.msra.mxu0 0.0
    %1262 = vmatprep.subr.mxu0 0.0
    %1263 = vmatpush1.msra.mxu0 0.0
    %1264 = vmatprep.subr.mxu0 0.0
    %1265 = vmatpush1.msra.mxu0 0.0
    %1266 = vmatprep.subr.mxu0 0.0
    %1267 = vmatpush1.msra.mxu0 0.0
    %1268 = vmatprep.subr.mxu0 0.0
    %1269 = vmatpush1.msra.mxu0 0.0
    %1270 = vmatprep.subr.mxu0 0.0
    %1271 = vmatpush1.msra.mxu0 0.0
    %1272 = vmatprep.subr.mxu0 0.0
    %1273 = vmatpush1.msra.mxu0 0.0
    %1274 = vmatprep.subr.mxu0 0.0
    %1275 = vmatpush1.msra.mxu0 0.0
    %1276 = vmatprep.subr.mxu0 0.0
    %1277 = vmatpush1.msra.mxu0 0.0
    %1278 = vmatprep.mubr.f32.mxu0 0.0
    %v1279 = vand.u32 %v849, 4294901760
    %v1280 = vsub.f32 %v849, %v1279
    %v1281 = vand.u32 %v1280, 4294901760
    %1282 = vmatmul.mubr.f32.gmra.mrb[0].mxu0 %v1281
    %v1283 = vpop.f32.mrb[0].mxu0
    %v1284 = vadd.f32 %v1183, %v1283
    %v1285 = vpop.f32.mrb[0].mxu0
    %1286 = vmatprep.mubr.f32.mxu0 0.0
    %v1287 = vand.u32 %v852, 4294901760
    %v1288 = vsub.f32 %v852, %v1287
    %v1289 = vand.u32 %v1288, 4294901760
    %1290 = vmatmul.mubr.f32.gmra.mrb[0].mxu0 %v1289
    %v1291 = vpop.f32.mrb[0].mxu0
    %v1292 = vadd.f32 %v1190, %v1291
    %v1293 = vpop.f32.mrb[0].mxu0
    %1294 = vmatprep.mubr.f32.mxu0 0.0
    %v1295 = vand.u32 %v855, 4294901760
    %v1296 = vsub.f32 %v855, %v1295
    %v1297 = vand.u32 %v1296, 4294901760
    %1298 = vmatmul.mubr.f32.gmra.mrb[0].mxu0 %v1297
    %v1299 = vpop.f32.mrb[0].mxu0
    %v1300 = vadd.f32 %v1197, %v1299
    %v1301 = vpop.f32.mrb[0].mxu0
    %1302 = vmatprep.mubr.f32.mxu0 0.0
    %v1303 = vand.u32 %v858, 4294901760
    %v1304 = vsub.f32 %v858, %v1303
    %v1305 = vand.u32 %v1304, 4294901760
    %1306 = vmatmul.mubr.f32.gmra.mrb[0].mxu0 %v1305
    %v1307 = vpop.f32.mrb[0].mxu0
    %v1308 = vadd.f32 %v1204, %v1307
    %v1309 = vpop.f32.mrb[0].mxu0
    %1310 = vdwg.mxu0
    %1311 = vmatprep.subr.mxu0 0.0
    %v1312 = vand.u32 %v812, 4294901760
    %v1313 = vsub.f32 %v812, %v1312
    %v1314 = vand.u32 %v1313, 4294901760
    %1315 = vmatpush1.msra.mxu0 %v1314
    %1316 = vmatprep.subr.mxu0 0.0
    %v1317 = vand.u32 %v813, 4294901760
    %v1318 = vsub.f32 %v813, %v1317
    %v1319 = vand.u32 %v1318, 4294901760
    %1320 = vmatpush1.msra.mxu0 %v1319
    %1321 = vmatprep.subr.mxu0 0.0
    %v1322 = vand.u32 %v814, 4294901760
    %v1323 = vsub.f32 %v814, %v1322
    %v1324 = vand.u32 %v1323, 4294901760
    %1325 = vmatpush1.msra.mxu0 %v1324
    %1326 = vmatprep.subr.mxu0 0.0
    %v1327 = vand.u32 %v815, 4294901760
    %v1328 = vsub.f32 %v815, %v1327
    %v1329 = vand.u32 %v1328, 4294901760
    %1330 = vmatpush1.msra.mxu0 %v1329
    %1331 = vmatprep.subr.mxu0 0.0
    %v1332 = vand.u32 %v816, 4294901760
    %v1333 = vsub.f32 %v816, %v1332
    %v1334 = vand.u32 %v1333, 4294901760
    %1335 = vmatpush1.msra.mxu0 %v1334
    %1336 = vmatprep.subr.mxu0 0.0
    %v1337 = vand.u32 %v817, 4294901760
    %v1338 = vsub.f32 %v817, %v1337
    %v1339 = vand.u32 %v1338, 4294901760
    %1340 = vmatpush1.msra.mxu0 %v1339
    %1341 = vmatprep.subr.mxu0 0.0
    %v1342 = vand.u32 %v862, 4294901760
    %v1343 = vsub.f32 %v862, %v1342
    %v1344 = vand.u32 %v1343, 4294901760
    %1345 = vmatpush1.msra.mxu0 %v1344
    %1346 = vmatprep.subr.mxu0 0.0
    %1347 = vmatpush1.msra.mxu0 0.0
    %1348 = vmatprep.subr.mxu0 0.0
    %1349 = vmatpush1.msra.mxu0 0.0
    %1350 = vmatprep.subr.mxu0 0.0
    %1351 = vmatpush1.msra.mxu0 0.0
    %1352 = vmatprep.subr.mxu0 0.0
    %1353 = vmatpush1.msra.mxu0 0.0
    %1354 = vmatprep.subr.mxu0 0.0
    %1355 = vmatpush1.msra.mxu0 0.0
    %1356 = vmatprep.subr.mxu0 0.0
    %1357 = vmatpush1.msra.mxu0 0.0
    %1358 = vmatprep.subr.mxu0 0.0
    %1359 = vmatpush1.msra.mxu0 0.0
    %1360 = vmatprep.subr.mxu0 0.0
    %1361 = vmatpush1.msra.mxu0 0.0
    %1362 = vmatprep.subr.mxu0 0.0
    %1363 = vmatpush1.msra.mxu0 0.0
    %1364 = vmatprep.subr.mxu0 0.0
    %1365 = vmatpush1.msra.mxu0 0.0
    %1366 = vmatprep.subr.mxu0 0.0
    %1367 = vmatpush1.msra.mxu0 0.0
    %1368 = vmatprep.subr.mxu0 0.0
    %1369 = vmatpush1.msra.mxu0 0.0
    %1370 = vmatprep.subr.mxu0 0.0
    %1371 = vmatpush1.msra.mxu0 0.0
    %1372 = vmatprep.subr.mxu0 0.0
    %1373 = vmatpush1.msra.mxu0 0.0
    %1374 = vmatprep.subr.mxu0 0.0
    %1375 = vmatpush1.msra.mxu0 0.0
    %1376 = vmatprep.subr.mxu0 0.0
    %1377 = vmatpush1.msra.mxu0 0.0
    %1378 = vmatprep.subr.mxu0 0.0
    %1379 = vmatpush1.msra.mxu0 0.0
    %1380 = vmatprep.subr.mxu0 0.0
    %1381 = vmatpush1.msra.mxu0 0.0
    %1382 = vmatprep.subr.mxu0 0.0
    %1383 = vmatpush1.msra.mxu0 0.0
    %1384 = vmatprep.subr.mxu0 0.0
    %1385 = vmatpush1.msra.mxu0 0.0
    %1386 = vmatprep.subr.mxu0 0.0
    %1387 = vmatpush1.msra.mxu0 0.0
    %1388 = vmatprep.subr.mxu0 0.0
    %1389 = vmatpush1.msra.mxu0 0.0
    %1390 = vmatprep.subr.mxu0 0.0
    %1391 = vmatpush1.msra.mxu0 0.0
    %1392 = vmatprep.subr.mxu0 0.0
    %1393 = vmatpush1.msra.mxu0 0.0
    %1394 = vmatprep.subr.mxu0 0.0
    %1395 = vmatpush1.msra.mxu0 0.0
    %1396 = vmatprep.mubr.f32.mxu0 0.0
    %v1397 = vand.u32 %v849, 4294901760
    %1398 = vmatmul.mubr.f32.gmra.mrb[0].mxu0 %v1397
    %v1399 = vpop.f32.mrb[0].mxu0
    %v1400 = vadd.f32 %v1284, %v1399
    %v1401 = vpop.f32.mrb[0].mxu0
    %1402 = vmatprep.mubr.f32.mxu0 0.0
    %v1403 = vand.u32 %v852, 4294901760
    %1404 = vmatmul.mubr.f32.gmra.mrb[0].mxu0 %v1403
    %v1405 = vpop.f32.mrb[0].mxu0
    %v1406 = vadd.f32 %v1292, %v1405
    %v1407 = vpop.f32.mrb[0].mxu0
    %1408 = vmatprep.mubr.f32.mxu0 0.0
    %v1409 = vand.u32 %v855, 4294901760
    %1410 = vmatmul.mubr.f32.gmra.mrb[0].mxu0 %v1409
    %v1411 = vpop.f32.mrb[0].mxu0
    %v1412 = vadd.f32 %v1300, %v1411
    %v1413 = vpop.f32.mrb[0].mxu0
    %1414 = vmatprep.mubr.f32.mxu0 0.0
    %v1415 = vand.u32 %v858, 4294901760
    %1416 = vmatmul.mubr.f32.gmra.mrb[0].mxu0 %v1415
    %v1417 = vpop.f32.mrb[0].mxu0
    %v1418 = vadd.f32 %v1308, %v1417
    %v1419 = vpop.f32.mrb[0].mxu0
    %1420 = vdwg.mxu0
    %1421 = vmatprep.subr.mxu0 0.0
    %v1422 = vand.u32 %v812, 4294901760
    %1423 = vmatpush1.msra.mxu0 %v1422
    %1424 = vmatprep.subr.mxu0 0.0
    %v1425 = vand.u32 %v813, 4294901760
    %1426 = vmatpush1.msra.mxu0 %v1425
    %1427 = vmatprep.subr.mxu0 0.0
    %v1428 = vand.u32 %v814, 4294901760
    %1429 = vmatpush1.msra.mxu0 %v1428
    %1430 = vmatprep.subr.mxu0 0.0
    %v1431 = vand.u32 %v815, 4294901760
    %1432 = vmatpush1.msra.mxu0 %v1431
    %1433 = vmatprep.subr.mxu0 0.0
    %v1434 = vand.u32 %v816, 4294901760
    %1435 = vmatpush1.msra.mxu0 %v1434
    %1436 = vmatprep.subr.mxu0 0.0
    %v1437 = vand.u32 %v817, 4294901760
    %1438 = vmatpush1.msra.mxu0 %v1437
    %1439 = vmatprep.subr.mxu0 0.0
    %v1440 = vand.u32 %v862, 4294901760
    %1441 = vmatpush1.msra.mxu0 %v1440
    %1442 = vmatprep.subr.mxu0 0.0
    %1443 = vmatpush1.msra.mxu0 0.0
    %1444 = vmatprep.subr.mxu0 0.0
    %1445 = vmatpush1.msra.mxu0 0.0
    %1446 = vmatprep.subr.mxu0 0.0
    %1447 = vmatpush1.msra.mxu0 0.0
    %1448 = vmatprep.subr.mxu0 0.0
    %1449 = vmatpush1.msra.mxu0 0.0
    %1450 = vmatprep.subr.mxu0 0.0
    %1451 = vmatpush1.msra.mxu0 0.0
    %1452 = vmatprep.subr.mxu0 0.0
    %1453 = vmatpush1.msra.mxu0 0.0
    %1454 = vmatprep.subr.mxu0 0.0
    %1455 = vmatpush1.msra.mxu0 0.0
    %1456 = vmatprep.subr.mxu0 0.0
    %1457 = vmatpush1.msra.mxu0 0.0
    %1458 = vmatprep.subr.mxu0 0.0
    %1459 = vmatpush1.msra.mxu0 0.0
    %1460 = vmatprep.subr.mxu0 0.0
    %1461 = vmatpush1.msra.mxu0 0.0
    %1462 = vmatprep.subr.mxu0 0.0
    %1463 = vmatpush1.msra.mxu0 0.0
    %1464 = vmatprep.subr.mxu0 0.0
    %1465 = vmatpush1.msra.mxu0 0.0
    %1466 = vmatprep.subr.mxu0 0.0
    %1467 = vmatpush1.msra.mxu0 0.0
    %1468 = vmatprep.subr.mxu0 0.0
    %1469 = vmatpush1.msra.mxu0 0.0
    %1470 = vmatprep.subr.mxu0 0.0
    %1471 = vmatpush1.msra.mxu0 0.0
    %1472 = vmatprep.subr.mxu0 0.0
    %1473 = vmatpush1.msra.mxu0 0.0
    %1474 = vmatprep.subr.mxu0 0.0
    %1475 = vmatpush1.msra.mxu0 0.0
    %1476 = vmatprep.subr.mxu0 0.0
    %1477 = vmatpush1.msra.mxu0 0.0
    %1478 = vmatprep.subr.mxu0 0.0
    %1479 = vmatpush1.msra.mxu0 0.0
    %1480 = vmatprep.subr.mxu0 0.0
    %1481 = vmatpush1.msra.mxu0 0.0
    %1482 = vmatprep.subr.mxu0 0.0
    %1483 = vmatpush1.msra.mxu0 0.0
    %1484 = vmatprep.subr.mxu0 0.0
    %1485 = vmatpush1.msra.mxu0 0.0
    %1486 = vmatprep.subr.mxu0 0.0
    %1487 = vmatpush1.msra.mxu0 0.0
    %1488 = vmatprep.subr.mxu0 0.0
    %1489 = vmatpush1.msra.mxu0 0.0
    %1490 = vmatprep.subr.mxu0 0.0
    %1491 = vmatpush1.msra.mxu0 0.0
    %1492 = vmatprep.mubr.f32.mxu0 0.0
    %v1493 = vand.u32 %v849, 4294901760
    %1494 = vmatmul.mubr.f32.gmra.mrb[0].mxu0 %v1493
    %v1495 = vpop.f32.mrb[0].mxu0
    %v1496 = vadd.f32 %v1400, %v1495
    %v1497 = vpop.f32.mrb[0].mxu0
    %1498 = vmatprep.mubr.f32.mxu0 0.0
    %v1499 = vand.u32 %v852, 4294901760
    %1500 = vmatmul.mubr.f32.gmra.mrb[0].mxu0 %v1499
    %v1501 = vpop.f32.mrb[0].mxu0
    %v1502 = vadd.f32 %v1406, %v1501
    %v1503 = vpop.f32.mrb[0].mxu0
    %1504 = vmatprep.mubr.f32.mxu0 0.0
    %v1505 = vand.u32 %v855, 4294901760
    %1506 = vmatmul.mubr.f32.gmra.mrb[0].mxu0 %v1505
    %v1507 = vpop.f32.mrb[0].mxu0
    %v1508 = vadd.f32 %v1412, %v1507
    %v1509 = vpop.f32.mrb[0].mxu0
    %1510 = vmatprep.mubr.f32.mxu0 0.0
    %v1511 = vand.u32 %v858, 4294901760
    %1512 = vmatmul.mubr.f32.gmra.mrb[0].mxu0 %v1511
    %v1513 = vpop.f32.mrb[0].mxu0
    %v1514 = vadd.f32 %v1418, %v1513
    %v1515 = vpop.f32.mrb[0].mxu0
    %1516 = vdwg.mxu0
    %v1517 = vtanh.pop %v1496
    %v1518 = vtanh.pop %v1502
    %v1519 = vtanh.pop %v1508
    %v1520 = vtanh.pop %v1514
    %v1521 = vld [vmem:[%s5] sm:$0xff]
    %v1522 = vld [vmem:[%s5 + $0x8] sm:$0x3]
    %v1523 = vld [vmem:[%s6] sm:$0xff]
    %v1524 = vld [vmem:[%s6 + $0x8] sm:$0x3]
    %1526 = vset.pattern.permute.xlu0 0
    %1527 = vperm.xlu0 %1526, %v1523
    %v1528 = vpop.permute.xlu0 %1527
    %1531 = vset.pattern.permute.xlu0 0
    %1532 = vperm.xlu0 %1531, %v1524
    %v1533 = vpop.permute.xlu0 %1532
    %vm1535 = vcmask 244736
    %v1537 = vsel %vm1535, %v1521, 0
    %v1540 = vsel %vm1535, %v1522, 0
    %vm1542 = vcmask 1045504
    %v1544 = vsel %vm1542, %v1520, 0
    %1546 = vmatprep.subr.mxu0 0.0
    %v1547 = vand.u32 %v1517, 4294901760
    %1548 = vmatpush1.msra.mxu0 %v1547
    %1549 = vmatprep.subr.mxu0 0.0
    %v1550 = vand.u32 %v1518, 4294901760
    %1551 = vmatpush1.msra.mxu0 %v1550
    %1552 = vmatprep.subr.mxu0 0.0
    %v1553 = vand.u32 %v1519, 4294901760
    %1554 = vmatpush1.msra.mxu0 %v1553
    %1555 = vmatprep.subr.mxu0 0.0
    %v1556 = vand.u32 %v1544, 4294901760
    %1557 = vmatpush1.msra.mxu0 %v1556
    %1558 = vmatprep.subr.mxu0 0.0
    %1559 = vmatpush1.msra.mxu0 0.0
    %1560 = vmatprep.subr.mxu0 0.0
    %1561 = vmatpush1.msra.mxu0 0.0
    %1562 = vmatprep.subr.mxu0 0.0
    %1563 = vmatpush1.msra.mxu0 0.0
    %1564 = vmatprep.subr.mxu0 0.0
    %1565 = vmatpush1.msra.mxu0 0.0
    %1566 = vmatprep.subr.mxu0 0.0
    %1567 = vmatpush1.msra.mxu0 0.0
    %1568 = vmatprep.subr.mxu0 0.0
    %1569 = vmatpush1.msra.mxu0 0.0
    %1570 = vmatprep.subr.mxu0 0.0
    %1571 = vmatpush1.msra.mxu0 0.0
    %1572 = vmatprep.subr.mxu0 0.0
    %1573 = vmatpush1.msra.mxu0 0.0
    %1574 = vmatprep.subr.mxu0 0.0
    %1575 = vmatpush1.msra.mxu0 0.0
    %1576 = vmatprep.subr.mxu0 0.0
    %1577 = vmatpush1.msra.mxu0 0.0
    %1578 = vmatprep.subr.mxu0 0.0
    %1579 = vmatpush1.msra.mxu0 0.0
    %1580 = vmatprep.subr.mxu0 0.0
    %1581 = vmatpush1.msra.mxu0 0.0
    %1582 = vmatprep.subr.mxu0 0.0
    %1583 = vmatpush1.msra.mxu0 0.0
    %1584 = vmatprep.subr.mxu0 0.0
    %1585 = vmatpush1.msra.mxu0 0.0
    %1586 = vmatprep.subr.mxu0 0.0
    %1587 = vmatpush1.msra.mxu0 0.0
    %1588 = vmatprep.subr.mxu0 0.0
    %1589 = vmatpush1.msra.mxu0 0.0
    %1590 = vmatprep.subr.mxu0 0.0
    %1591 = vmatpush1.msra.mxu0 0.0
    %1592 = vmatprep.subr.mxu0 0.0
    %1593 = vmatpush1.msra.mxu0 0.0
    %1594 = vmatprep.subr.mxu0 0.0
    %1595 = vmatpush1.msra.mxu0 0.0
    %1596 = vmatprep.subr.mxu0 0.0
    %1597 = vmatpush1.msra.mxu0 0.0
    %1598 = vmatprep.subr.mxu0 0.0
    %1599 = vmatpush1.msra.mxu0 0.0
    %1600 = vmatprep.subr.mxu0 0.0
    %1601 = vmatpush1.msra.mxu0 0.0
    %1602 = vmatprep.subr.mxu0 0.0
    %1603 = vmatpush1.msra.mxu0 0.0
    %1604 = vmatprep.subr.mxu0 0.0
    %1605 = vmatpush1.msra.mxu0 0.0
    %1606 = vmatprep.subr.mxu0 0.0
    %1607 = vmatpush1.msra.mxu0 0.0
    %1608 = vmatprep.subr.mxu0 0.0
    %1609 = vmatpush1.msra.mxu0 0.0
    %1610 = vmatprep.subr.mxu0 0.0
    %1611 = vmatpush1.msra.mxu0 0.0
    %1612 = vmatprep.subr.mxu0 0.0
    %1613 = vmatpush1.msra.mxu0 0.0
    %1614 = vmatprep.mubr.f32.mxu0 0.0
    %v1615 = vand.u32 %v1537, 4294901760
    %v1616 = vsub.f32 %v1537, %v1615
    %v1617 = vand.u32 %v1616, 4294901760
    %v1618 = vsub.f32 %v1616, %v1617
    %v1619 = vand.u32 %v1618, 4294901760
    %1620 = vmatmul.mubr.f32.gmra.mrb[0].mxu0 %v1619
    %v1621 = vpop.f32.mrb[0].mxu0
    %v1622 = vadd.f32 %v1528, %v1621
    %v1623 = vpop.f32.mrb[0].mxu0
    %1624 = vmatprep.mubr.f32.mxu0 0.0
    %v1625 = vand.u32 %v1540, 4294901760
    %v1626 = vsub.f32 %v1540, %v1625
    %v1627 = vand.u32 %v1626, 4294901760
    %v1628 = vsub.f32 %v1626, %v1627
    %v1629 = vand.u32 %v1628, 4294901760
    %1630 = vmatmul.mubr.f32.gmra.mrb[0].mxu0 %v1629
    %v1631 = vpop.f32.mrb[0].mxu0
    %v1632 = vadd.f32 %v1533, %v1631
    %v1633 = vpop.f32.mrb[0].mxu0
    %1634 = vdwg.mxu0
    %1635 = vmatprep.subr.mxu0 0.0
    %v1636 = vand.u32 %v1517, 4294901760
    %v1637 = vsub.f32 %v1517, %v1636
    %v1638 = vand.u32 %v1637, 4294901760
    %v1639 = vsub.f32 %v1637, %v1638
    %v1640 = vand.u32 %v1639, 4294901760
    %1641 = vmatpush1.msra.mxu0 %v1640
    %1642 = vmatprep.subr.mxu0 0.0
    %v1643 = vand.u32 %v1518, 4294901760
    %v1644 = vsub.f32 %v1518, %v1643
    %v1645 = vand.u32 %v1644, 4294901760
    %v1646 = vsub.f32 %v1644, %v1645
    %v1647 = vand.u32 %v1646, 4294901760
    %1648 = vmatpush1.msra.mxu0 %v1647
    %1649 = vmatprep.subr.mxu0 0.0
    %v1650 = vand.u32 %v1519, 4294901760
    %v1651 = vsub.f32 %v1519, %v1650
    %v1652 = vand.u32 %v1651, 4294901760
    %v1653 = vsub.f32 %v1651, %v1652
    %v1654 = vand.u32 %v1653, 4294901760
    %1655 = vmatpush1.msra.mxu0 %v1654
    %1656 = vmatprep.subr.mxu0 0.0
    %v1657 = vand.u32 %v1544, 4294901760
    %v1658 = vsub.f32 %v1544, %v1657
    %v1659 = vand.u32 %v1658, 4294901760
    %v1660 = vsub.f32 %v1658, %v1659
    %v1661 = vand.u32 %v1660, 4294901760
    %1662 = vmatpush1.msra.mxu0 %v1661
    %1663 = vmatprep.subr.mxu0 0.0
    %1664 = vmatpush1.msra.mxu0 0.0
    %1665 = vmatprep.subr.mxu0 0.0
    %1666 = vmatpush1.msra.mxu0 0.0
    %1667 = vmatprep.subr.mxu0 0.0
    %1668 = vmatpush1.msra.mxu0 0.0
    %1669 = vmatprep.subr.mxu0 0.0
    %1670 = vmatpush1.msra.mxu0 0.0
    %1671 = vmatprep.subr.mxu0 0.0
    %1672 = vmatpush1.msra.mxu0 0.0
    %1673 = vmatprep.subr.mxu0 0.0
    %1674 = vmatpush1.msra.mxu0 0.0
    %1675 = vmatprep.subr.mxu0 0.0
    %1676 = vmatpush1.msra.mxu0 0.0
    %1677 = vmatprep.subr.mxu0 0.0
    %1678 = vmatpush1.msra.mxu0 0.0
    %1679 = vmatprep.subr.mxu0 0.0
    %1680 = vmatpush1.msra.mxu0 0.0
    %1681 = vmatprep.subr.mxu0 0.0
    %1682 = vmatpush1.msra.mxu0 0.0
    %1683 = vmatprep.subr.mxu0 0.0
    %1684 = vmatpush1.msra.mxu0 0.0
    %1685 = vmatprep.subr.mxu0 0.0
    %1686 = vmatpush1.msra.mxu0 0.0
    %1687 = vmatprep.subr.mxu0 0.0
    %1688 = vmatpush1.msra.mxu0 0.0
    %1689 = vmatprep.subr.mxu0 0.0
    %1690 = vmatpush1.msra.mxu0 0.0
    %1691 = vmatprep.subr.mxu0 0.0
    %1692 = vmatpush1.msra.mxu0 0.0
    %1693 = vmatprep.subr.mxu0 0.0
    %1694 = vmatpush1.msra.mxu0 0.0
    %1695 = vmatprep.subr.mxu0 0.0
    %1696 = vmatpush1.msra.mxu0 0.0
    %1697 = vmatprep.subr.mxu0 0.0
    %1698 = vmatpush1.msra.mxu0 0.0
    %1699 = vmatprep.subr.mxu0 0.0
    %1700 = vmatpush1.msra.mxu0 0.0
    %1701 = vmatprep.subr.mxu0 0.0
    %1702 = vmatpush1.msra.mxu0 0.0
    %1703 = vmatprep.subr.mxu0 0.0
    %1704 = vmatpush1.msra.mxu0 0.0
    %1705 = vmatprep.subr.mxu0 0.0
    %1706 = vmatpush1.msra.mxu0 0.0
    %1707 = vmatprep.subr.mxu0 0.0
    %1708 = vmatpush1.msra.mxu0 0.0
    %1709 = vmatprep.subr.mxu0 0.0
    %1710 = vmatpush1.msra.mxu0 0.0
    %1711 = vmatprep.subr.mxu0 0.0
    %1712 = vmatpush1.msra.mxu0 0.0
    %1713 = vmatprep.subr.mxu0 0.0
    %1714 = vmatpush1.msra.mxu0 0.0
    %1715 = vmatprep.subr.mxu0 0.0
    %1716 = vmatpush1.msra.mxu0 0.0
    %1717 = vmatprep.subr.mxu0 0.0
    %1718 = vmatpush1.msra.mxu0 0.0
    %1719 = vmatprep.mubr.f32.mxu0 0.0
    %v1720 = vand.u32 %v1537, 4294901760
    %1721 = vmatmul.mubr.f32.gmra.mrb[0].mxu0 %v1720
    %v1722 = vpop.f32.mrb[0].mxu0
    %v1723 = vadd.f32 %v1622, %v1722
    %v1724 = vpop.f32.mrb[0].mxu0
    %1725 = vmatprep.mubr.f32.mxu0 0.0
    %v1726 = vand.u32 %v1540, 4294901760
    %1727 = vmatmul.mubr.f32.gmra.mrb[0].mxu0 %v1726
    %v1728 = vpop.f32.mrb[0].mxu0
    %v1729 = vadd.f32 %v1632, %v1728
    %v1730 = vpop.f32.mrb[0].mxu0
    %1731 = vdwg.mxu0
    %1732 = vmatprep.subr.mxu0 0.0
    %v1733 = vand.u32 %v1517, 4294901760
    %v1734 = vsub.f32 %v1517, %v1733
    %1735 = vmatpush1.msra.mxu0 %v1734
    %1736 = vmatprep.subr.mxu0 0.0
    %v1737 = vand.u32 %v1518, 4294901760
    %v1738 = vsub.f32 %v1518, %v1737
    %1739 = vmatpush1.msra.mxu0 %v1738
    %1740 = vmatprep.subr.mxu0 0.0
    %v1741 = vand.u32 %v1519, 4294901760
    %v1742 = vsub.f32 %v1519, %v1741
    %1743 = vmatpush1.msra.mxu0 %v1742
    %1744 = vmatprep.subr.mxu0 0.0
    %v1745 = vand.u32 %v1544, 4294901760
    %v1746 = vsub.f32 %v1544, %v1745
    %1747 = vmatpush1.msra.mxu0 %v1746
    %1748 = vmatprep.subr.mxu0 0.0
    %1749 = vmatpush1.msra.mxu0 0.0
    %1750 = vmatprep.subr.mxu0 0.0
    %1751 = vmatpush1.msra.mxu0 0.0
    %1752 = vmatprep.subr.mxu0 0.0
    %1753 = vmatpush1.msra.mxu0 0.0
    %1754 = vmatprep.subr.mxu0 0.0
    %1755 = vmatpush1.msra.mxu0 0.0
    %1756 = vmatprep.subr.mxu0 0.0
    %1757 = vmatpush1.msra.mxu0 0.0
    %1758 = vmatprep.subr.mxu0 0.0
    %1759 = vmatpush1.msra.mxu0 0.0
    %1760 = vmatprep.subr.mxu0 0.0
    %1761 = vmatpush1.msra.mxu0 0.0
    %1762 = vmatprep.subr.mxu0 0.0
    %1763 = vmatpush1.msra.mxu0 0.0
    %1764 = vmatprep.subr.mxu0 0.0
    %1765 = vmatpush1.msra.mxu0 0.0
    %1766 = vmatprep.subr.mxu0 0.0
    %1767 = vmatpush1.msra.mxu0 0.0
    %1768 = vmatprep.subr.mxu0 0.0
    %1769 = vmatpush1.msra.mxu0 0.0
    %1770 = vmatprep.subr.mxu0 0.0
    %1771 = vmatpush1.msra.mxu0 0.0
    %1772 = vmatprep.subr.mxu0 0.0
    %1773 = vmatpush1.msra.mxu0 0.0
    %1774 = vmatprep.subr.mxu0 0.0
    %1775 = vmatpush1.msra.mxu0 0.0
    %1776 = vmatprep.subr.mxu0 0.0
    %1777 = vmatpush1.msra.mxu0 0.0
    %1778 = vmatprep.subr.mxu0 0.0
    %1779 = vmatpush1.msra.mxu0 0.0
    %1780 = vmatprep.subr.mxu0 0.0
    %1781 = vmatpush1.msra.mxu0 0.0
    %1782 = vmatprep.subr.mxu0 0.0
    %1783 = vmatpush1.msra.mxu0 0.0
    %1784 = vmatprep.subr.mxu0 0.0
    %1785 = vmatpush1.msra.mxu0 0.0
    %1786 = vmatprep.subr.mxu0 0.0
    %1787 = vmatpush1.msra.mxu0 0.0
    %1788 = vmatprep.subr.mxu0 0.0
    %1789 = vmatpush1.msra.mxu0 0.0
    %1790 = vmatprep.subr.mxu0 0.0
    %1791 = vmatpush1.msra.mxu0 0.0
    %1792 = vmatprep.subr.mxu0 0.0
    %1793 = vmatpush1.msra.mxu0 0.0
    %1794 = vmatprep.subr.mxu0 0.0
    %1795 = vmatpush1.msra.mxu0 0.0
    %1796 = vmatprep.subr.mxu0 0.0
    %1797 = vmatpush1.msra.mxu0 0.0
    %1798 = vmatprep.subr.mxu0 0.0
    %1799 = vmatpush1.msra.mxu0 0.0
    %1800 = vmatprep.subr.mxu0 0.0
    %1801 = vmatpush1.msra.mxu0 0.0
    %1802 = vmatprep.subr.mxu0 0.0
    %1803 = vmatpush1.msra.mxu0 0.0
    %1804 = vmatprep.mubr.f32.mxu0 0.0
    %v1805 = vand.u32 %v1537, 4294901760
    %v1806 = vsub.f32 %v1537, %v1805
    %1807 = vmatmul.mubr.f32.gmra.mrb[0].mxu0 %v1806
    %v1808 = vpop.f32.mrb[0].mxu0
    %v1809 = vadd.f32 %v1723, %v1808
    %v1810 = vpop.f32.mrb[0].mxu0
    %1811 = vmatprep.mubr.f32.mxu0 0.0
    %v1812 = vand.u32 %v1540, 4294901760
    %v1813 = vsub.f32 %v1540, %v1812
    %1814 = vmatmul.mubr.f32.gmra.mrb[0].mxu0 %v1813
    %v1815 = vpop.f32.mrb[0].mxu0
    %v1816 = vadd.f32 %v1729, %v1815
    %v1817 = vpop.f32.mrb[0].mxu0
    %1818 = vdwg.mxu0
    %1819 = vmatprep.subr.mxu0 0.0
    %v1820 = vand.u32 %v1517, 4294901760
    %1821 = vmatpush1.msra.mxu0 %v1820
    %1822 = vmatprep.subr.mxu0 0.0
    %v1823 = vand.u32 %v1518, 4294901760
    %1824 = vmatpush1.msra.mxu0 %v1823
    %1825 = vmatprep.subr.mxu0 0.0
    %v1826 = vand.u32 %v1519, 4294901760
    %1827 = vmatpush1.msra.mxu0 %v1826
    %1828 = vmatprep.subr.mxu0 0.0
    %v1829 = vand.u32 %v1544, 4294901760
    %1830 = vmatpush1.msra.mxu0 %v1829
    %1831 = vmatprep.subr.mxu0 0.0
    %1832 = vmatpush1.msra.mxu0 0.0
    %1833 = vmatprep.subr.mxu0 0.0
    %1834 = vmatpush1.msra.mxu0 0.0
    %1835 = vmatprep.subr.mxu0 0.0
    %1836 = vmatpush1.msra.mxu0 0.0
    %1837 = vmatprep.subr.mxu0 0.0
    %1838 = vmatpush1.msra.mxu0 0.0
    %1839 = vmatprep.subr.mxu0 0.0
    %1840 = vmatpush1.msra.mxu0 0.0
    %1841 = vmatprep.subr.mxu0 0.0
    %1842 = vmatpush1.msra.mxu0 0.0
    %1843 = vmatprep.subr.mxu0 0.0
    %1844 = vmatpush1.msra.mxu0 0.0
    %1845 = vmatprep.subr.mxu0 0.0
    %1846 = vmatpush1.msra.mxu0 0.0
    %1847 = vmatprep.subr.mxu0 0.0
    %1848 = vmatpush1.msra.mxu0 0.0
    %1849 = vmatprep.subr.mxu0 0.0
    %1850 = vmatpush1.msra.mxu0 0.0
    %1851 = vmatprep.subr.mxu0 0.0
    %1852 = vmatpush1.msra.mxu0 0.0
    %1853 = vmatprep.subr.mxu0 0.0
    %1854 = vmatpush1.msra.mxu0 0.0
    %1855 = vmatprep.subr.mxu0 0.0
    %1856 = vmatpush1.msra.mxu0 0.0
    %1857 = vmatprep.subr.mxu0 0.0
    %1858 = vmatpush1.msra.mxu0 0.0
    %1859 = vmatprep.subr.mxu0 0.0
    %1860 = vmatpush1.msra.mxu0 0.0
    %1861 = vmatprep.subr.mxu0 0.0
    %1862 = vmatpush1.msra.mxu0 0.0
    %1863 = vmatprep.subr.mxu0 0.0
    %1864 = vmatpush1.msra.mxu0 0.0
    %1865 = vmatprep.subr.mxu0 0.0
    %1866 = vmatpush1.msra.mxu0 0.0
    %1867 = vmatprep.subr.mxu0 0.0
    %1868 = vmatpush1.msra.mxu0 0.0
    %1869 = vmatprep.subr.mxu0 0.0
    %1870 = vmatpush1.msra.mxu0 0.0
    %1871 = vmatprep.subr.mxu0 0.0
    %1872 = vmatpush1.msra.mxu0 0.0
    %1873 = vmatprep.subr.mxu0 0.0
    %1874 = vmatpush1.msra.mxu0 0.0
    %1875 = vmatprep.subr.mxu0 0.0
    %1876 = vmatpush1.msra.mxu0 0.0
    %1877 = vmatprep.subr.mxu0 0.0
    %1878 = vmatpush1.msra.mxu0 0.0
    %1879 = vmatprep.subr.mxu0 0.0
    %1880 = vmatpush1.msra.mxu0 0.0
    %1881 = vmatprep.subr.mxu0 0.0
    %1882 = vmatpush1.msra.mxu0 0.0
    %1883 = vmatprep.subr.mxu0 0.0
    %1884 = vmatpush1.msra.mxu0 0.0
    %1885 = vmatprep.subr.mxu0 0.0
    %1886 = vmatpush1.msra.mxu0 0.0
    %1887 = vmatprep.mubr.f32.mxu0 0.0
    %v1888 = vand.u32 %v1537, 4294901760
    %v1889 = vsub.f32 %v1537, %v1888
    %v1890 = vand.u32 %v1889, 4294901760
    %1891 = vmatmul.mubr.f32.gmra.mrb[0].mxu0 %v1890
    %v1892 = vpop.f32.mrb[0].mxu0
    %v1893 = vadd.f32 %v1809, %v1892
    %v1894 = vpop.f32.mrb[0].mxu0
    %1895 = vmatprep.mubr.f32.mxu0 0.0
    %v1896 = vand.u32 %v1540, 4294901760
    %v1897 = vsub.f32 %v1540, %v1896
    %v1898 = vand.u32 %v1897, 4294901760
    %1899 = vmatmul.mubr.f32.gmra.mrb[0].mxu0 %v1898
    %v1900 = vpop.f32.mrb[0].mxu0
    %v1901 = vadd.f32 %v1816, %v1900
    %v1902 = vpop.f32.mrb[0].mxu0
    %1903 = vdwg.mxu0
    %1904 = vmatprep.subr.mxu0 0.0
    %v1905 = vand.u32 %v1517, 4294901760
    %v1906 = vsub.f32 %v1517, %v1905
    %v1907 = vand.u32 %v1906, 4294901760
    %1908 = vmatpush1.msra.mxu0 %v1907
    %1909 = vmatprep.subr.mxu0 0.0
    %v1910 = vand.u32 %v1518, 4294901760
    %v1911 = vsub.f32 %v1518, %v1910
    %v1912 = vand.u32 %v1911, 4294901760
    %1913 = vmatpush1.msra.mxu0 %v1912
    %1914 = vmatprep.subr.mxu0 0.0
    %v1915 = vand.u32 %v1519, 4294901760
    %v1916 = vsub.f32 %v1519, %v1915
    %v1917 = vand.u32 %v1916, 4294901760
    %1918 = vmatpush1.msra.mxu0 %v1917
    %1919 = vmatprep.subr.mxu0 0.0
    %v1920 = vand.u32 %v1544, 4294901760
    %v1921 = vsub.f32 %v1544, %v1920
    %v1922 = vand.u32 %v1921, 4294901760
    %1923 = vmatpush1.msra.mxu0 %v1922
    %1924 = vmatprep.subr.mxu0 0.0
    %1925 = vmatpush1.msra.mxu0 0.0
    %1926 = vmatprep.subr.mxu0 0.0
    %1927 = vmatpush1.msra.mxu0 0.0
    %1928 = vmatprep.subr.mxu0 0.0
    %1929 = vmatpush1.msra.mxu0 0.0
    %1930 = vmatprep.subr.mxu0 0.0
    %1931 = vmatpush1.msra.mxu0 0.0
    %1932 = vmatprep.subr.mxu0 0.0
    %1933 = vmatpush1.msra.mxu0 0.0
    %1934 = vmatprep.subr.mxu0 0.0
    %1935 = vmatpush1.msra.mxu0 0.0
    %1936 = vmatprep.subr.mxu0 0.0
    %1937 = vmatpush1.msra.mxu0 0.0
    %1938 = vmatprep.subr.mxu0 0.0
    %1939 = vmatpush1.msra.mxu0 0.0
    %1940 = vmatprep.subr.mxu0 0.0
    %1941 = vmatpush1.msra.mxu0 0.0
    %1942 = vmatprep.subr.mxu0 0.0
    %1943 = vmatpush1.msra.mxu0 0.0
    %1944 = vmatprep.subr.mxu0 0.0
    %1945 = vmatpush1.msra.mxu0 0.0
    %1946 = vmatprep.subr.mxu0 0.0
    %1947 = vmatpush1.msra.mxu0 0.0
    %1948 = vmatprep.subr.mxu0 0.0
    %1949 = vmatpush1.msra.mxu0 0.0
    %1950 = vmatprep.subr.mxu0 0.0
    %1951 = vmatpush1.msra.mxu0 0.0
    %1952 = vmatprep.subr.mxu0 0.0
    %1953 = vmatpush1.msra.mxu0 0.0
    %1954 = vmatprep.subr.mxu0 0.0
    %1955 = vmatpush1.msra.mxu0 0.0
    %1956 = vmatprep.subr.mxu0 0.0
    %1957 = vmatpush1.msra.mxu0 0.0
    %1958 = vmatprep.subr.mxu0 0.0
    %1959 = vmatpush1.msra.mxu0 0.0
    %1960 = vmatprep.subr.mxu0 0.0
    %1961 = vmatpush1.msra.mxu0 0.0
    %1962 = vmatprep.subr.mxu0 0.0
    %1963 = vmatpush1.msra.mxu0 0.0
    %1964 = vmatprep.subr.mxu0 0.0
    %1965 = vmatpush1.msra.mxu0 0.0
    %1966 = vmatprep.subr.mxu0 0.0
    %1967 = vmatpush1.msra.mxu0 0.0
    %1968 = vmatprep.subr.mxu0 0.0
    %1969 = vmatpush1.msra.mxu0 0.0
    %1970 = vmatprep.subr.mxu0 0.0
    %1971 = vmatpush1.msra.mxu0 0.0
    %1972 = vmatprep.subr.mxu0 0.0
    %1973 = vmatpush1.msra.mxu0 0.0
    %1974 = vmatprep.subr.mxu0 0.0
    %1975 = vmatpush1.msra.mxu0 0.0
    %1976 = vmatprep.subr.mxu0 0.0
    %1977 = vmatpush1.msra.mxu0 0.0
    %1978 = vmatprep.subr.mxu0 0.0
    %1979 = vmatpush1.msra.mxu0 0.0
    %1980 = vmatprep.mubr.f32.mxu0 0.0
    %v1981 = vand.u32 %v1537, 4294901760
    %1982 = vmatmul.mubr.f32.gmra.mrb[0].mxu0 %v1981
    %v1983 = vpop.f32.mrb[0].mxu0
    %v1984 = vadd.f32 %v1893, %v1983
    %v1985 = vpop.f32.mrb[0].mxu0
    %1986 = vmatprep.mubr.f32.mxu0 0.0
    %v1987 = vand.u32 %v1540, 4294901760
    %1988 = vmatmul.mubr.f32.gmra.mrb[0].mxu0 %v1987
    %v1989 = vpop.f32.mrb[0].mxu0
    %v1990 = vadd.f32 %v1901, %v1989
    %v1991 = vpop.f32.mrb[0].mxu0
    %1992 = vdwg.mxu0
    %1993 = vmatprep.subr.mxu0 0.0
    %v1994 = vand.u32 %v1517, 4294901760
    %1995 = vmatpush1.msra.mxu0 %v1994
    %1996 = vmatprep.subr.mxu0 0.0
    %v1997 = vand.u32 %v1518, 4294901760
    %1998 = vmatpush1.msra.mxu0 %v1997
    %1999 = vmatprep.subr.mxu0 0.0
    %v2000 = vand.u32 %v1519, 4294901760
    %2001 = vmatpush1.msra.mxu0 %v2000
    %2002 = vmatprep.subr.mxu0 0.0
    %v2003 = vand.u32 %v1544, 4294901760
    %2004 = vmatpush1.msra.mxu0 %v2003
    %2005 = vmatprep.subr.mxu0 0.0
    %2006 = vmatpush1.msra.mxu0 0.0
    %2007 = vmatprep.subr.mxu0 0.0
    %2008 = vmatpush1.msra.mxu0 0.0
    %2009 = vmatprep.subr.mxu0 0.0
    %2010 = vmatpush1.msra.mxu0 0.0
    %2011 = vmatprep.subr.mxu0 0.0
    %2012 = vmatpush1.msra.mxu0 0.0
    %2013 = vmatprep.subr.mxu0 0.0
    %2014 = vmatpush1.msra.mxu0 0.0
    %2015 = vmatprep.subr.mxu0 0.0
    %2016 = vmatpush1.msra.mxu0 0.0
    %2017 = vmatprep.subr.mxu0 0.0
    %2018 = vmatpush1.msra.mxu0 0.0
    %2019 = vmatprep.subr.mxu0 0.0
    %2020 = vmatpush1.msra.mxu0 0.0
    %2021 = vmatprep.subr.mxu0 0.0
    %2022 = vmatpush1.msra.mxu0 0.0
    %2023 = vmatprep.subr.mxu0 0.0
    %2024 = vmatpush1.msra.mxu0 0.0
    %2025 = vmatprep.subr.mxu0 0.0
    %2026 = vmatpush1.msra.mxu0 0.0
    %2027 = vmatprep.subr.mxu0 0.0
    %2028 = vmatpush1.msra.mxu0 0.0
    %2029 = vmatprep.subr.mxu0 0.0
    %2030 = vmatpush1.msra.mxu0 0.0
    %2031 = vmatprep.subr.mxu0 0.0
    %2032 = vmatpush1.msra.mxu0 0.0
    %2033 = vmatprep.subr.mxu0 0.0
    %2034 = vmatpush1.msra.mxu0 0.0
    %2035 = vmatprep.subr.mxu0 0.0
    %2036 = vmatpush1.msra.mxu0 0.0
    %2037 = vmatprep.subr.mxu0 0.0
    %2038 = vmatpush1.msra.mxu0 0.0
    %2039 = vmatprep.subr.mxu0 0.0
    %2040 = vmatpush1.msra.mxu0 0.0
    %2041 = vmatprep.subr.mxu0 0.0
    %2042 = vmatpush1.msra.mxu0 0.0
    %2043 = vmatprep.subr.mxu0 0.0
    %2044 = vmatpush1.msra.mxu0 0.0
    %2045 = vmatprep.subr.mxu0 0.0
    %2046 = vmatpush1.msra.mxu0 0.0
    %2047 = vmatprep.subr.mxu0 0.0
    %2048 = vmatpush1.msra.mxu0 0.0
    %2049 = vmatprep.subr.mxu0 0.0
    %2050 = vmatpush1.msra.mxu0 0.0
    %2051 = vmatprep.subr.mxu0 0.0
    %2052 = vmatpush1.msra.mxu0 0.0
    %2053 = vmatprep.subr.mxu0 0.0
    %2054 = vmatpush1.msra.mxu0 0.0
    %2055 = vmatprep.subr.mxu0 0.0
    %2056 = vmatpush1.msra.mxu0 0.0
    %2057 = vmatprep.subr.mxu0 0.0
    %2058 = vmatpush1.msra.mxu0 0.0
    %2059 = vmatprep.subr.mxu0 0.0
    %2060 = vmatpush1.msra.mxu0 0.0
    %2061 = vmatprep.mubr.f32.mxu0 0.0
    %v2062 = vand.u32 %v1537, 4294901760
    %2063 = vmatmul.mubr.f32.gmra.mrb[0].mxu0 %v2062
    %v2064 = vpop.f32.mrb[0].mxu0
    %v2065 = vadd.f32 %v1984, %v2064
    %v2066 = vpop.f32.mrb[0].mxu0
    %2067 = vmatprep.mubr.f32.mxu0 0.0
    %v2068 = vand.u32 %v1540, 4294901760
    %2069 = vmatmul.mubr.f32.gmra.mrb[0].mxu0 %v2068
    %v2070 = vpop.f32.mrb[0].mxu0
    %v2071 = vadd.f32 %v1990, %v2070
    %v2072 = vpop.f32.mrb[0].mxu0
    %2073 = vdwg.mxu0
    %v2074 = vtanh.pop %v2065
    %v2075 = vtanh.pop %v2071
    %v2076 = vld [vmem:[%s7] sm:$0x3]
    %v2077 = vld [vmem:[%s8] sm:$0x3]
    %2079 = vset.pattern.permute.xlu0 0
    %2080 = vperm.xlu0 %2079, %v2077
    %v2081 = vpop.permute.xlu0 %2080
    %vm2083 = vcmask 80896
    %v2085 = vsel %vm2083, %v2076, 0
    %v2088 = vsel %vm860, %v2075, 0
    %2090 = vmatprep.subr.mxu0 0.0
    %v2091 = vand.u32 %v2074, 4294901760
    %2092 = vmatpush1.msra.mxu0 %v2091
    %2093 = vmatprep.subr.mxu0 0.0
    %v2094 = vand.u32 %v2088, 4294901760
    %2095 = vmatpush1.msra.mxu0 %v2094
    %2096 = vmatprep.subr.mxu0 0.0
    %2097 = vmatpush1.msra.mxu0 0.0
    %2098 = vmatprep.subr.mxu0 0.0
    %2099 = vmatpush1.msra.mxu0 0.0
    %2100 = vmatprep.subr.mxu0 0.0
    %2101 = vmatpush1.msra.mxu0 0.0
    %2102 = vmatprep.subr.mxu0 0.0
    %2103 = vmatpush1.msra.mxu0 0.0
    %2104 = vmatprep.subr.mxu0 0.0
    %2105 = vmatpush1.msra.mxu0 0.0
    %2106 = vmatprep.subr.mxu0 0.0
    %2107 = vmatpush1.msra.mxu0 0.0
    %2108 = vmatprep.subr.mxu0 0.0
    %2109 = vmatpush1.msra.mxu0 0.0
    %2110 = vmatprep.subr.mxu0 0.0
    %2111 = vmatpush1.msra.mxu0 0.0
    %2112 = vmatprep.subr.mxu0 0.0
    %2113 = vmatpush1.msra.mxu0 0.0
    %2114 = vmatprep.subr.mxu0 0.0
    %2115 = vmatpush1.msra.mxu0 0.0
    %2116 = vmatprep.subr.mxu0 0.0
    %2117 = vmatpush1.msra.mxu0 0.0
    %2118 = vmatprep.subr.mxu0 0.0
    %2119 = vmatpush1.msra.mxu0 0.0
    %2120 = vmatprep.subr.mxu0 0.0
    %2121 = vmatpush1.msra.mxu0 0.0
    %2122 = vmatprep.subr.mxu0 0.0
    %2123 = vmatpush1.msra.mxu0 0.0
    %2124 = vmatprep.subr.mxu0 0.0
    %2125 = vmatpush1.msra.mxu0 0.0
    %2126 = vmatprep.subr.mxu0 0.0
    %2127 = vmatpush1.msra.mxu0 0.0
    %2128 = vmatprep.subr.mxu0 0.0
    %2129 = vmatpush1.msra.mxu0 0.0
    %2130 = vmatprep.subr.mxu0 0.0
    %2131 = vmatpush1.msra.mxu0 0.0
    %2132 = vmatprep.subr.mxu0 0.0
    %2133 = vmatpush1.msra.mxu0 0.0
    %2134 = vmatprep.subr.mxu0 0.0
    %2135 = vmatpush1.msra.mxu0 0.0
    %2136 = vmatprep.subr.mxu0 0.0
    %2137 = vmatpush1.msra.mxu0 0.0
    %2138 = vmatprep.subr.mxu0 0.0
    %2139 = vmatpush1.msra.mxu0 0.0
    %2140 = vmatprep.subr.mxu0 0.0
    %2141 = vmatpush1.msra.mxu0 0.0
    %2142 = vmatprep.subr.mxu0 0.0
    %2143 = vmatpush1.msra.mxu0 0.0
    %2144 = vmatprep.subr.mxu0 0.0
    %2145 = vmatpush1.msra.mxu0 0.0
    %2146 = vmatprep.subr.mxu0 0.0
    %2147 = vmatpush1.msra.mxu0 0.0
    %2148 = vmatprep.subr.mxu0 0.0
    %2149 = vmatpush1.msra.mxu0 0.0
    %2150 = vmatprep.subr.mxu0 0.0
    %2151 = vmatpush1.msra.mxu0 0.0
    %2152 = vmatprep.subr.mxu0 0.0
    %2153 = vmatpush1.msra.mxu0 0.0
    %2154 = vmatprep.subr.mxu0 0.0
    %2155 = vmatpush1.msra.mxu0 0.0
    %2156 = vmatprep.mubr.f32.mxu0 0.0
    %v2157 = vand.u32 %v2085, 4294901760
    %v2158 = vsub.f32 %v2085, %v2157
    %v2159 = vand.u32 %v2158, 4294901760
    %v2160 = vsub.f32 %v2158, %v2159
    %v2161 = vand.u32 %v2160, 4294901760
    %2162 = vmatmul.mubr.f32.gmra.mrb[0].mxu0 %v2161
    %v2163 = vpop.f32.mrb[0].mxu0
    %v2164 = vadd.f32 %v2081, %v2163
    %v2165 = vpop.f32.mrb[0].mxu0
    %2166 = vdwg.mxu0
    %2167 = vmatprep.subr.mxu0 0.0
    %v2168 = vand.u32 %v2074, 4294901760
    %v2169 = vsub.f32 %v2074, %v2168
    %v2170 = vand.u32 %v2169, 4294901760
    %v2171 = vsub.f32 %v2169, %v2170
    %v2172 = vand.u32 %v2171, 4294901760
    %2173 = vmatpush1.msra.mxu0 %v2172
    %2174 = vmatprep.subr.mxu0 0.0
    %v2175 = vand.u32 %v2088, 4294901760
    %v2176 = vsub.f32 %v2088, %v2175
    %v2177 = vand.u32 %v2176, 4294901760
    %v2178 = vsub.f32 %v2176, %v2177
    %v2179 = vand.u32 %v2178, 4294901760
    %2180 = vmatpush1.msra.mxu0 %v2179
    %2181 = vmatprep.subr.mxu0 0.0
    %2182 = vmatpush1.msra.mxu0 0.0
    %2183 = vmatprep.subr.mxu0 0.0
    %2184 = vmatpush1.msra.mxu0 0.0
    %2185 = vmatprep.subr.mxu0 0.0
    %2186 = vmatpush1.msra.mxu0 0.0
    %2187 = vmatprep.subr.mxu0 0.0
    %2188 = vmatpush1.msra.mxu0 0.0
    %2189 = vmatprep.subr.mxu0 0.0
    %2190 = vmatpush1.msra.mxu0 0.0
    %2191 = vmatprep.subr.mxu0 0.0
    %2192 = vmatpush1.msra.mxu0 0.0
    %2193 = vmatprep.subr.mxu0 0.0
    %2194 = vmatpush1.msra.mxu0 0.0
    %2195 = vmatprep.subr.mxu0 0.0
    %2196 = vmatpush1.msra.mxu0 0.0
    %2197 = vmatprep.subr.mxu0 0.0
    %2198 = vmatpush1.msra.mxu0 0.0
    %2199 = vmatprep.subr.mxu0 0.0
    %2200 = vmatpush1.msra.mxu0 0.0
    %2201 = vmatprep.subr.mxu0 0.0
    %2202 = vmatpush1.msra.mxu0 0.0
    %2203 = vmatprep.subr.mxu0 0.0
    %2204 = vmatpush1.msra.mxu0 0.0
    %2205 = vmatprep.subr.mxu0 0.0
    %2206 = vmatpush1.msra.mxu0 0.0
    %2207 = vmatprep.subr.mxu0 0.0
    %2208 = vmatpush1.msra.mxu0 0.0
    %2209 = vmatprep.subr.mxu0 0.0
    %2210 = vmatpush1.msra.mxu0 0.0
    %2211 = vmatprep.subr.mxu0 0.0
    %2212 = vmatpush1.msra.mxu0 0.0
    %2213 = vmatprep.subr.mxu0 0.0
    %2214 = vmatpush1.msra.mxu0 0.0
    %2215 = vmatprep.subr.mxu0 0.0
    %2216 = vmatpush1.msra.mxu0 0.0
    %2217 = vmatprep.subr.mxu0 0.0
    %2218 = vmatpush1.msra.mxu0 0.0
    %2219 = vmatprep.subr.mxu0 0.0
    %2220 = vmatpush1.msra.mxu0 0.0
    %2221 = vmatprep.subr.mxu0 0.0
    %2222 = vmatpush1.msra.mxu0 0.0
    %2223 = vmatprep.subr.mxu0 0.0
    %2224 = vmatpush1.msra.mxu0 0.0
    %2225 = vmatprep.subr.mxu0 0.0
    %2226 = vmatpush1.msra.mxu0 0.0
    %2227 = vmatprep.subr.mxu0 0.0
    %2228 = vmatpush1.msra.mxu0 0.0
    %2229 = vmatprep.subr.mxu0 0.0
    %2230 = vmatpush1.msra.mxu0 0.0
    %2231 = vmatprep.subr.mxu0 0.0
    %2232 = vmatpush1.msra.mxu0 0.0
    %2233 = vmatprep.subr.mxu0 0.0
    %2234 = vmatpush1.msra.mxu0 0.0
    %2235 = vmatprep.subr.mxu0 0.0
    %2236 = vmatpush1.msra.mxu0 0.0
    %2237 = vmatprep.subr.mxu0 0.0
    %2238 = vmatpush1.msra.mxu0 0.0
    %2239 = vmatprep.subr.mxu0 0.0
    %2240 = vmatpush1.msra.mxu0 0.0
    %2241 = vmatprep.mubr.f32.mxu0 0.0
    %v2242 = vand.u32 %v2085, 4294901760
    %2243 = vmatmul.mubr.f32.gmra.mrb[0].mxu0 %v2242
    %v2244 = vpop.f32.mrb[0].mxu0
    %v2245 = vadd.f32 %v2164, %v2244
    %v2246 = vpop.f32.mrb[0].mxu0
    %2247 = vdwg.mxu0
    %2248 = vmatprep.subr.mxu0 0.0
    %v2249 = vand.u32 %v2074, 4294901760
    %v2250 = vsub.f32 %v2074, %v2249
    %2251 = vmatpush1.msra.mxu0 %v2250
    %2252 = vmatprep.subr.mxu0 0.0
    %v2253 = vand.u32 %v2088, 4294901760
    %v2254 = vsub.f32 %v2088, %v2253
    %2255 = vmatpush1.msra.mxu0 %v2254
    %2256 = vmatprep.subr.mxu0 0.0
    %2257 = vmatpush1.msra.mxu0 0.0
    %2258 = vmatprep.subr.mxu0 0.0
    %2259 = vmatpush1.msra.mxu0 0.0
    %2260 = vmatprep.subr.mxu0 0.0
    %2261 = vmatpush1.msra.mxu0 0.0
    %2262 = vmatprep.subr.mxu0 0.0
    %2263 = vmatpush1.msra.mxu0 0.0
    %2264 = vmatprep.subr.mxu0 0.0
    %2265 = vmatpush1.msra.mxu0 0.0
    %2266 = vmatprep.subr.mxu0 0.0
    %2267 = vmatpush1.msra.mxu0 0.0
    %2268 = vmatprep.subr.mxu0 0.0
    %2269 = vmatpush1.msra.mxu0 0.0
    %2270 = vmatprep.subr.mxu0 0.0
    %2271 = vmatpush1.msra.mxu0 0.0
    %2272 = vmatprep.subr.mxu0 0.0
    %2273 = vmatpush1.msra.mxu0 0.0
    %2274 = vmatprep.subr.mxu0 0.0
    %2275 = vmatpush1.msra.mxu0 0.0
    %2276 = vmatprep.subr.mxu0 0.0
    %2277 = vmatpush1.msra.mxu0 0.0
    %2278 = vmatprep.subr.mxu0 0.0
    %2279 = vmatpush1.msra.mxu0 0.0
    %2280 = vmatprep.subr.mxu0 0.0
    %2281 = vmatpush1.msra.mxu0 0.0
    %2282 = vmatprep.subr.mxu0 0.0
    %2283 = vmatpush1.msra.mxu0 0.0
    %2284 = vmatprep.subr.mxu0 0.0
    %2285 = vmatpush1.msra.mxu0 0.0
    %2286 = vmatprep.subr.mxu0 0.0
    %2287 = vmatpush1.msra.mxu0 0.0
    %2288 = vmatprep.subr.mxu0 0.0
    %2289 = vmatpush1.msra.mxu0 0.0
    %2290 = vmatprep.subr.mxu0 0.0
    %2291 = vmatpush1.msra.mxu0 0.0
    %2292 = vmatprep.subr.mxu0 0.0
    %2293 = vmatpush1.msra.mxu0 0.0
    %2294 = vmatprep.subr.mxu0 0.0
    %2295 = vmatpush1.msra.mxu0 0.0
    %2296 = vmatprep.subr.mxu0 0.0
    %2297 = vmatpush1.msra.mxu0 0.0
    %2298 = vmatprep.subr.mxu0 0.0
    %2299 = vmatpush1.msra.mxu0 0.0
    %2300 = vmatprep.subr.mxu0 0.0
    %2301 = vmatpush1.msra.mxu0 0.0
    %2302 = vmatprep.subr.mxu0 0.0
    %2303 = vmatpush1.msra.mxu0 0.0
    %2304 = vmatprep.subr.mxu0 0.0
    %2305 = vmatpush1.msra.mxu0 0.0
    %2306 = vmatprep.subr.mxu0 0.0
    %2307 = vmatpush1.msra.mxu0 0.0
    %2308 = vmatprep.subr.mxu0 0.0
    %2309 = vmatpush1.msra.mxu0 0.0
    %2310 = vmatprep.subr.mxu0 0.0
    %2311 = vmatpush1.msra.mxu0 0.0
    %2312 = vmatprep.subr.mxu0 0.0
    %2313 = vmatpush1.msra.mxu0 0.0
    %2314 = vmatprep.subr.mxu0 0.0
    %2315 = vmatpush1.msra.mxu0 0.0
    %2316 = vmatprep.mubr.f32.mxu0 0.0
    %v2317 = vand.u32 %v2085, 4294901760
    %v2318 = vsub.f32 %v2085, %v2317
    %2319 = vmatmul.mubr.f32.gmra.mrb[0].mxu0 %v2318
    %v2320 = vpop.f32.mrb[0].mxu0
    %v2321 = vadd.f32 %v2245, %v2320
    %v2322 = vpop.f32.mrb[0].mxu0
    %2323 = vdwg.mxu0
    %2324 = vmatprep.subr.mxu0 0.0
    %v2325 = vand.u32 %v2074, 4294901760
    %2326 = vmatpush1.msra.mxu0 %v2325
    %2327 = vmatprep.subr.mxu0 0.0
    %v2328 = vand.u32 %v2088, 4294901760
    %2329 = vmatpush1.msra.mxu0 %v2328
    %2330 = vmatprep.subr.mxu0 0.0
    %2331 = vmatpush1.msra.mxu0 0.0
    %2332 = vmatprep.subr.mxu0 0.0
    %2333 = vmatpush1.msra.mxu0 0.0
    %2334 = vmatprep.subr.mxu0 0.0
    %2335 = vmatpush1.msra.mxu0 0.0
    %2336 = vmatprep.subr.mxu0 0.0
    %2337 = vmatpush1.msra.mxu0 0.0
    %2338 = vmatprep.subr.mxu0 0.0
    %2339 = vmatpush1.msra.mxu0 0.0
    %2340 = vmatprep.subr.mxu0 0.0
    %2341 = vmatpush1.msra.mxu0 0.0
    %2342 = vmatprep.subr.mxu0 0.0
    %2343 = vmatpush1.msra.mxu0 0.0
    %2344 = vmatprep.subr.mxu0 0.0
    %2345 = vmatpush1.msra.mxu0 0.0
    %2346 = vmatprep.subr.mxu0 0.0
    %2347 = vmatpush1.msra.mxu0 0.0
    %2348 = vmatprep.subr.mxu0 0.0
    %2349 = vmatpush1.msra.mxu0 0.0
    %2350 = vmatprep.subr.mxu0 0.0
    %2351 = vmatpush1.msra.mxu0 0.0
    %2352 = vmatprep.subr.mxu0 0.0
    %2353 = vmatpush1.msra.mxu0 0.0
    %2354 = vmatprep.subr.mxu0 0.0
    %2355 = vmatpush1.msra.mxu0 0.0
    %2356 = vmatprep.subr.mxu0 0.0
    %2357 = vmatpush1.msra.mxu0 0.0
    %2358 = vmatprep.subr.mxu0 0.0
    %2359 = vmatpush1.msra.mxu0 0.0
    %2360 = vmatprep.subr.mxu0 0.0
    %2361 = vmatpush1.msra.mxu0 0.0
    %2362 = vmatprep.subr.mxu0 0.0
    %2363 = vmatpush1.msra.mxu0 0.0
    %2364 = vmatprep.subr.mxu0 0.0
    %2365 = vmatpush1.msra.mxu0 0.0
    %2366 = vmatprep.subr.mxu0 0.0
    %2367 = vmatpush1.msra.mxu0 0.0
    %2368 = vmatprep.subr.mxu0 0.0
    %2369 = vmatpush1.msra.mxu0 0.0
    %2370 = vmatprep.subr.mxu0 0.0
    %2371 = vmatpush1.msra.mxu0 0.0
    %2372 = vmatprep.subr.mxu0 0.0
    %2373 = vmatpush1.msra.mxu0 0.0
    %2374 = vmatprep.subr.mxu0 0.0
    %2375 = vmatpush1.msra.mxu0 0.0
    %2376 = vmatprep.subr.mxu0 0.0
    %2377 = vmatpush1.msra.mxu0 0.0
    %2378 = vmatprep.subr.mxu0 0.0
    %2379 = vmatpush1.msra.mxu0 0.0
    %2380 = vmatprep.subr.mxu0 0.0
    %2381 = vmatpush1.msra.mxu0 0.0
    %2382 = vmatprep.subr.mxu0 0.0
    %2383 = vmatpush1.msra.mxu0 0.0
    %2384 = vmatprep.subr.mxu0 0.0
    %2385 = vmatpush1.msra.mxu0 0.0
    %2386 = vmatprep.subr.mxu0 0.0
    %2387 = vmatpush1.msra.mxu0 0.0
    %2388 = vmatprep.subr.mxu0 0.0
    %2389 = vmatpush1.msra.mxu0 0.0
    %2390 = vmatprep.mubr.f32.mxu0 0.0
    %v2391 = vand.u32 %v2085, 4294901760
    %v2392 = vsub.f32 %v2085, %v2391
    %v2393 = vand.u32 %v2392, 4294901760
    %2394 = vmatmul.mubr.f32.gmra.mrb[0].mxu0 %v2393
    %v2395 = vpop.f32.mrb[0].mxu0
    %v2396 = vadd.f32 %v2321, %v2395
    %v2397 = vpop.f32.mrb[0].mxu0
    %2398 = vdwg.mxu0
    %2399 = vmatprep.subr.mxu0 0.0
    %v2400 = vand.u32 %v2074, 4294901760
    %v2401 = vsub.f32 %v2074, %v2400
    %v2402 = vand.u32 %v2401, 4294901760
    %2403 = vmatpush1.msra.mxu0 %v2402
    %2404 = vmatprep.subr.mxu0 0.0
    %v2405 = vand.u32 %v2088, 4294901760
    %v2406 = vsub.f32 %v2088, %v2405
    %v2407 = vand.u32 %v2406, 4294901760
    %2408 = vmatpush1.msra.mxu0 %v2407
    %2409 = vmatprep.subr.mxu0 0.0
    %2410 = vmatpush1.msra.mxu0 0.0
    %2411 = vmatprep.subr.mxu0 0.0
    %2412 = vmatpush1.msra.mxu0 0.0
    %2413 = vmatprep.subr.mxu0 0.0
    %2414 = vmatpush1.msra.mxu0 0.0
    %2415 = vmatprep.subr.mxu0 0.0
    %2416 = vmatpush1.msra.mxu0 0.0
    %2417 = vmatprep.subr.mxu0 0.0
    %2418 = vmatpush1.msra.mxu0 0.0
    %2419 = vmatprep.subr.mxu0 0.0
    %2420 = vmatpush1.msra.mxu0 0.0
    %2421 = vmatprep.subr.mxu0 0.0
    %2422 = vmatpush1.msra.mxu0 0.0
    %2423 = vmatprep.subr.mxu0 0.0
    %2424 = vmatpush1.msra.mxu0 0.0
    %2425 = vmatprep.subr.mxu0 0.0
    %2426 = vmatpush1.msra.mxu0 0.0
    %2427 = vmatprep.subr.mxu0 0.0
    %2428 = vmatpush1.msra.mxu0 0.0
    %2429 = vmatprep.subr.mxu0 0.0
    %2430 = vmatpush1.msra.mxu0 0.0
    %2431 = vmatprep.subr.mxu0 0.0
    %2432 = vmatpush1.msra.mxu0 0.0
    %2433 = vmatprep.subr.mxu0 0.0
    %2434 = vmatpush1.msra.mxu0 0.0
    %2435 = vmatprep.subr.mxu0 0.0
    %2436 = vmatpush1.msra.mxu0 0.0
    %2437 = vmatprep.subr.mxu0 0.0
    %2438 = vmatpush1.msra.mxu0 0.0
    %2439 = vmatprep.subr.mxu0 0.0
    %2440 = vmatpush1.msra.mxu0 0.0
    %2441 = vmatprep.subr.mxu0 0.0
    %2442 = vmatpush1.msra.mxu0 0.0
    %2443 = vmatprep.subr.mxu0 0.0
    %2444 = vmatpush1.msra.mxu0 0.0
    %2445 = vmatprep.subr.mxu0 0.0
    %2446 = vmatpush1.msra.mxu0 0.0
    %2447 = vmatprep.subr.mxu0 0.0
    %2448 = vmatpush1.msra.mxu0 0.0
    %2449 = vmatprep.subr.mxu0 0.0
    %2450 = vmatpush1.msra.mxu0 0.0
    %2451 = vmatprep.subr.mxu0 0.0
    %2452 = vmatpush1.msra.mxu0 0.0
    %2453 = vmatprep.subr.mxu0 0.0
    %2454 = vmatpush1.msra.mxu0 0.0
    %2455 = vmatprep.subr.mxu0 0.0
    %2456 = vmatpush1.msra.mxu0 0.0
    %2457 = vmatprep.subr.mxu0 0.0
    %2458 = vmatpush1.msra.mxu0 0.0
    %2459 = vmatprep.subr.mxu0 0.0
    %2460 = vmatpush1.msra.mxu0 0.0
    %2461 = vmatprep.subr.mxu0 0.0
    %2462 = vmatpush1.msra.mxu0 0.0
    %2463 = vmatprep.subr.mxu0 0.0
    %2464 = vmatpush1.msra.mxu0 0.0
    %2465 = vmatprep.subr.mxu0 0.0
    %2466 = vmatpush1.msra.mxu0 0.0
    %2467 = vmatprep.subr.mxu0 0.0
    %2468 = vmatpush1.msra.mxu0 0.0
    %2469 = vmatprep.mubr.f32.mxu0 0.0
    %v2470 = vand.u32 %v2085, 4294901760
    %2471 = vmatmul.mubr.f32.gmra.mrb[0].mxu0 %v2470
    %v2472 = vpop.f32.mrb[0].mxu0
    %v2473 = vadd.f32 %v2396, %v2472
    %v2474 = vpop.f32.mrb[0].mxu0
    %2475 = vdwg.mxu0
    %2476 = vmatprep.subr.mxu0 0.0
    %v2477 = vand.u32 %v2074, 4294901760
    %2478 = vmatpush1.msra.mxu0 %v2477
    %2479 = vmatprep.subr.mxu0 0.0
    %v2480 = vand.u32 %v2088, 4294901760
    %2481 = vmatpush1.msra.mxu0 %v2480
    %2482 = vmatprep.subr.mxu0 0.0
    %2483 = vmatpush1.msra.mxu0 0.0
    %2484 = vmatprep.subr.mxu0 0.0
    %2485 = vmatpush1.msra.mxu0 0.0
    %2486 = vmatprep.subr.mxu0 0.0
    %2487 = vmatpush1.msra.mxu0 0.0
    %2488 = vmatprep.subr.mxu0 0.0
    %2489 = vmatpush1.msra.mxu0 0.0
    %2490 = vmatprep.subr.mxu0 0.0
    %2491 = vmatpush1.msra.mxu0 0.0
    %2492 = vmatprep.subr.mxu0 0.0
    %2493 = vmatpush1.msra.mxu0 0.0
    %2494 = vmatprep.subr.mxu0 0.0
    %2495 = vmatpush1.msra.mxu0 0.0
    %2496 = vmatprep.subr.mxu0 0.0
    %2497 = vmatpush1.msra.mxu0 0.0
    %2498 = vmatprep.subr.mxu0 0.0
    %2499 = vmatpush1.msra.mxu0 0.0
    %2500 = vmatprep.subr.mxu0 0.0
    %2501 = vmatpush1.msra.mxu0 0.0
    %2502 = vmatprep.subr.mxu0 0.0
    %2503 = vmatpush1.msra.mxu0 0.0
    %2504 = vmatprep.subr.mxu0 0.0
    %2505 = vmatpush1.msra.mxu0 0.0
    %2506 = vmatprep.subr.mxu0 0.0
    %2507 = vmatpush1.msra.mxu0 0.0
    %2508 = vmatprep.subr.mxu0 0.0
    %2509 = vmatpush1.msra.mxu0 0.0
    %2510 = vmatprep.subr.mxu0 0.0
    %2511 = vmatpush1.msra.mxu0 0.0
    %2512 = vmatprep.subr.mxu0 0.0
    %2513 = vmatpush1.msra.mxu0 0.0
    %2514 = vmatprep.subr.mxu0 0.0
    %2515 = vmatpush1.msra.mxu0 0.0
    %2516 = vmatprep.subr.mxu0 0.0
    %2517 = vmatpush1.msra.mxu0 0.0
    %2518 = vmatprep.subr.mxu0 0.0
    %2519 = vmatpush1.msra.mxu0 0.0
    %2520 = vmatprep.subr.mxu0 0.0
    %2521 = vmatpush1.msra.mxu0 0.0
    %2522 = vmatprep.subr.mxu0 0.0
    %2523 = vmatpush1.msra.mxu0 0.0
    %2524 = vmatprep.subr.mxu0 0.0
    %2525 = vmatpush1.msra.mxu0 0.0
    %2526 = vmatprep.subr.mxu0 0.0
    %2527 = vmatpush1.msra.mxu0 0.0
    %2528 = vmatprep.subr.mxu0 0.0
    %2529 = vmatpush1.msra.mxu0 0.0
    %2530 = vmatprep.subr.mxu0 0.0
    %2531 = vmatpush1.msra.mxu0 0.0
    %2532 = vmatprep.subr.mxu0 0.0
    %2533 = vmatpush1.msra.mxu0 0.0
    %2534 = vmatprep.subr.mxu0 0.0
    %2535 = vmatpush1.msra.mxu0 0.0
    %2536 = vmatprep.subr.mxu0 0.0
    %2537 = vmatpush1.msra.mxu0 0.0
    %2538 = vmatprep.subr.mxu0 0.0
    %2539 = vmatpush1.msra.mxu0 0.0
    %2540 = vmatprep.subr.mxu0 0.0
    %2541 = vmatpush1.msra.mxu0 0.0
    %2542 = vmatprep.mubr.f32.mxu0 0.0
    %v2543 = vand.u32 %v2085, 4294901760
    %2544 = vmatmul.mubr.f32.gmra.mrb[0].mxu0 %v2543
    %v2545 = vpop.f32.mrb[0].mxu0
    %v2546 = vadd.f32 %v2473, %v2545
    %v2547 = vpop.f32.mrb[0].mxu0
    %2548 = vdwg.mxu0
    %vm2549 = vcmask 58368
    %2550 = vst.msk [vmem:[#allocation2] sm:$0x3] %vm2549, %v2546
    // Predicated region
    $region38: #{tpu_custom_call.1} parent=1 // pred_check
      _
    $region39: #{tpu_custom_call.1} parent=1 // pred_check_branch
      %2552 = sbr.rel (0) target = $region41
    $region40: #{tpu_custom_call.1} parent=1 // pred_region
      %s2554 = ssub.s32 32, 32
      %2555 = vsyncadd [#allocation3], %s2554
      %s2557 = sshll.u32 [#allocation2], 4
      %s2558 = int_to_ptr.vmem [resolvable:$true] %s2557
      %2560 = dma.vmem_to_hbm [thread:$0]  %s2558, 32, %s9, [#allocation3]
    $region41: #{tpu_custom_call.1} parent=1 // pred_fallthru
      _
    // Predicated region
    $region42: #{tpu_custom_call.1} parent=1 // pred_check
      _
    $region43: #{tpu_custom_call.1} parent=1 // pred_check_branch
      %2562 = sbr.rel (0) target = $region45
    $region44: #{tpu_custom_call.1} parent=1 // pred_region
      %2563 = dma.done [#allocation3], 32
    $region45: #{tpu_custom_call.1} parent=1 // pred_fallthru
      _
    %2564 = vsyncpa [#allocation3], 1

</llo_original>
